<compile_context>
chip_gen: v7x
topology: tpu7x:2x2x1
jax: 0.10.0
libtpu: 0.0.40
codegen_flags: <defaults>
</compile_context>

<pallas_src>
import functools

import jax
import jax.numpy as jnp
from jax import lax
from jax.experimental import pallas as pl
from jax.experimental.pallas import tpu as pltpu


def same_padding_for_conv3d(input_size, kernel_size, stride):
    # Mirror of samePaddingForConv3d (inputSize = (_, D, H, W)).
    _, d_in, h_in, w_in = input_size
    d_pad = ((d_in - 1) * stride[0] - d_in + (kernel_size[0] - 1) + 1) // 2
    h_pad = ((h_in - 1) * stride[1] - h_in + (kernel_size[1] - 1) + 1) // 2
    w_pad = ((w_in - 1) * stride[2] - w_in + (kernel_size[2] - 1) + 1) // 2
    return (d_pad, h_pad, w_pad)


def _decconv3d_kernel(w_sref, b_sref, x_ref, o_ref, *, D, Wp, L, KD, KH, KW, Cin):
    """One (batch, output-channel) pair per grid step.

    w_sref : SMEM (Cout*KD*KH*KW*Cin,) f32 scalar-prefetched weights,
             flattened in [cout, kd, kh, kw, cin] order.
    b_sref : SMEM (Cout,) f32 bias.
    x_ref  : VMEM (1, Cin, Dp, L) zero-padded input slab, L = Hp*Wp (lane-dense).
    o_ref  : VMEM (1, 1, D, L) output in the padded (Hp, Wp) frame.
    """
    cout = pl.program_id(1)
    w_base = cout * (KD * KH * KW * Cin)

    x = x_ref[0]                                  # (Cin, Dp, L)
    # Single-vreg f32 accumulator (small enough to live in registers; for large
    # tiles this would move to a VMEM scratch).
    acc = jnp.zeros((D, L), jnp.float32)

    for kd in range(KD):
        # Rows d+kd of the padded slab for every output depth d (cheap, hoisted per kd).
        xd = x[:, kd:kd + D, :]                   # (Cin, D, L)
        for kh in range(KH):
            for kw in range(KW):
                s = kh * Wp + kw                  # lane shift of this (kh, kw) tap
                # shifted[cin, d, q] = xd[cin, d, q + s]; the wrap-around only lands
                # on padded-frame lanes that the wrapper slices away.
                xs = pltpu.roll(xd, shift=(L - s) % L, axis=2) if s else xd
                tap = (kd * KH + kh) * KW + kw
                for cin in range(Cin):
                    w_scalar = w_sref[w_base + tap * Cin + cin]   # SMEM scalar
                    acc = acc + w_scalar * xs[cin]                # VPU broadcast FMA

    acc = acc + b_sref[cout]
    o_ref[0, 0] = acc.astype(o_ref.dtype)


def dec_conv3d_forward(x_ncdhw, v, g, bias, kernel_size, padding):
    """Forward pass of DecConv3D.

    x_ncdhw : (N, Cin, D, H, W)
    v       : (Cout, Cin, KD, KH, KW)   weight_norm direction parameter
    g       : (Cout, 1, 1, 1, 1)        weight_norm magnitude parameter
    bias    : (Cout,)
    Returns : (N, Cout, D, H, W)  (stride 1, 'same' zero padding)
    """
    N, Cin, D, H, W = x_ncdhw.shape
    Cout = v.shape[0]
    KD, KH, KW = kernel_size
    pd, ph, pw = padding
    # Symmetric integer padding only reproduces 'same' output for odd kernel dims.
    assert KD % 2 == 1 and KH % 2 == 1 and KW % 2 == 1, "odd kernel dims required"

    # weight_norm reparametrization: W = g * v / ||v||, norm over all dims but dim 0.
    v_norm = jnp.sqrt(jnp.sum(v * v, axis=(1, 2, 3, 4), keepdims=True))
    w_eff = (g * v / v_norm).astype(jnp.float32)          # (Cout, Cin, KD, KH, KW)
    # Flat SMEM layout [cout, kd, kh, kw, cin] for scalar reads in the kernel.
    w_flat = jnp.transpose(w_eff, (0, 2, 3, 4, 1)).reshape(-1)

    # Zero-pad spatial dims (no transpose: stay channel-major), flatten (Hp, Wp) into lanes.
    Dp, Hp, Wp = D + 2 * pd, H + 2 * ph, W + 2 * pw
    L = Hp * Wp
    x_pad = jnp.pad(x_ncdhw, ((0, 0), (0, 0), (pd, pd), (ph, ph), (pw, pw)))
    x_pad = x_pad.reshape(N, Cin, Dp, L)

    kernel = functools.partial(
        _decconv3d_kernel, D=D, Wp=Wp, L=L, KD=KD, KH=KH, KW=KW, Cin=Cin
    )

    out_pf = pl.pallas_call(
        kernel,
        out_shape=jax.ShapeDtypeStruct((N, Cout, D, L), x_ncdhw.dtype),
        grid_spec=pltpu.PrefetchScalarGridSpec(
            num_scalar_prefetch=2,                 # weights + bias land in SMEM
            grid=(N, Cout),
            in_specs=[
                # Same block for all cout steps of a given n -> DMA'd once per n.
                pl.BlockSpec((1, Cin, Dp, L), lambda n, c, w_s, b_s: (n, 0, 0, 0)),
            ],
            out_specs=pl.BlockSpec((1, 1, D, L), lambda n, c, w_s, b_s: (n, c, 0, 0)),
        ),
        compiler_params=pltpu.CompilerParams(
            dimension_semantics=("parallel", "parallel")
        ),
    )(w_flat, bias.astype(jnp.float32), x_pad)

    # Padded-frame -> valid 'same' output; already in NCDHW order, just slice.
    out = out_pf.reshape(N, Cout, D, Hp, Wp)[:, :, :, :H, :W]
    return out


if __name__ == "__main__":
    # Module construction (mirrors DecConv3D.__init__):
    #   inputShape = (C, D, H, W); in_channels = inputShape[1]
    #   (pick C == D so this is unambiguous); numFilters * decayRate -> Cout.
    N, Cin, D, H, W = 2, 4, 4, 8, 8
    num_filters, decay_rate = 8, 0.5
    Cout = int(round(num_filters * decay_rate))               # 4
    kernel_size = (3, 3, 3)
    input_shape = (Cin, D, H, W)
    padding = same_padding_for_conv3d(input_shape, kernel_size, (1, 1, 1))  # (1,1,1)

    key = jax.random.PRNGKey(0)
    kx, kv, kg, kb = jax.random.split(key, 4)
    x = jax.random.normal(kx, (N, Cin, D, H, W), dtype=jnp.float32)
    v = jax.random.normal(kv, (Cout, Cin) + kernel_size, dtype=jnp.float32) * 0.1
    g = jax.random.uniform(kg, (Cout, 1, 1, 1, 1), dtype=jnp.float32,
                           minval=0.5, maxval=1.5)
    bias = jax.random.normal(kb, (Cout,), dtype=jnp.float32) * 0.1

    out = dec_conv3d_forward(x, v, g, bias, kernel_size, padding)
    out = jax.block_until_ready(out)

    # Cross-check against XLA's conv (same weight_norm reparametrization).
    w_eff = g * v / jnp.sqrt(jnp.sum(v * v, axis=(1, 2, 3, 4), keepdims=True))
    ref = lax.conv_general_dilated(
        x, w_eff, window_strides=(1, 1, 1),
        padding=[(padding[0], padding[0]), (padding[1], padding[1]),
                 (padding[2], padding[2])],
        dimension_numbers=("NCDHW", "OIDHW", "NCDHW"),
    ) + bias.reshape(1, Cout, 1, 1, 1)

    assert out.shape == (N, Cout, D, H, W)
    assert jnp.allclose(out, ref, atol=1e-4, rtol=1e-4)
    print("KERNEL_OK")
</pallas_src>

<mosaic_0001>
module attributes {stable_mosaic.version = 11 : i64} {
  func.func @_decconv3d_kernel(%arg0: i32, %arg1: i32, %arg2: memref<432xf32, #tpu.memory_space<smem>>, %arg3: memref<4xf32, #tpu.memory_space<smem>>, %arg4: memref<1x4x6x100xf32, #tpu.memory_space<vmem>>, %arg5: memref<1x1x4x100xf32, #tpu.memory_space<vmem>>) attributes {dimension_semantics = [#tpu.dimension_semantics<parallel>, #tpu.dimension_semantics<parallel>], iteration_bounds = array<i64: 2, 4>, scalar_prefetch = 2 : i64, scratch_operands = 0 : i64, tpu.core_type = #tpu.core_type<tc>, window_params = [{transform_indices = @transform_0, window_bounds = array<i64: 1, 4, 6, 100>}, {transform_indices = @transform_1, window_bounds = array<i64: 1, 1, 4, 100>}]} {
    %c108_i32 = arith.constant 108 : i32
    %0 = arith.muli %arg1, %c108_i32 : i32
    %c0 = arith.constant 0 : index
    %c0_0 = arith.constant 0 : index
    %c0_1 = arith.constant 0 : index
    %c0_2 = arith.constant 0 : index
    %1 = vector.load %arg4[%c0, %c0_0, %c0_1, %c0_2] : memref<1x4x6x100xf32, #tpu.memory_space<vmem>>, vector<1x4x6x100xf32>
    %2 = vector.shape_cast %1 : vector<1x4x6x100xf32> to vector<4x6x100xf32>
    %cst = arith.constant 0.000000e+00 : f32
    %3 = vector.broadcast %cst : f32 to vector<4x100xf32>
    %4 = vector.extract_strided_slice %2 {offsets = [0, 0, 0], sizes = [4, 4, 100], strides = [1, 1, 1]} : vector<4x6x100xf32> to vector<4x4x100xf32>
    %c0_i32 = arith.constant 0 : i32
    %5 = arith.addi %0, %c0_i32 : i32
    %c0_i32_3 = arith.constant 0 : i32
    %6 = arith.addi %5, %c0_i32_3 : i32
    %7 = arith.index_cast %6 : i32 to index
    %8 = memref.load %arg2[%7] : memref<432xf32, #tpu.memory_space<smem>>
    %9 = vector.extract_strided_slice %4 {offsets = [0, 0, 0], sizes = [1, 4, 100], strides = [1, 1, 1]} : vector<4x4x100xf32> to vector<1x4x100xf32>
    %10 = vector.shape_cast %9 : vector<1x4x100xf32> to vector<4x100xf32>
    %11 = vector.broadcast %8 : f32 to vector<4x100xf32>
    %12 = arith.mulf %11, %10 : vector<4x100xf32>
    %13 = arith.addf %3, %12 : vector<4x100xf32>
    %c0_i32_4 = arith.constant 0 : i32
    %14 = arith.addi %0, %c0_i32_4 : i32
    %c1_i32 = arith.constant 1 : i32
    %15 = arith.addi %14, %c1_i32 : i32
    %16 = arith.index_cast %15 : i32 to index
    %17 = memref.load %arg2[%16] : memref<432xf32, #tpu.memory_space<smem>>
    %18 = vector.extract_strided_slice %4 {offsets = [1, 0, 0], sizes = [1, 4, 100], strides = [1, 1, 1]} : vector<4x4x100xf32> to vector<1x4x100xf32>
    %19 = vector.shape_cast %18 : vector<1x4x100xf32> to vector<4x100xf32>
    %20 = vector.broadcast %17 : f32 to vector<4x100xf32>
    %21 = arith.mulf %20, %19 : vector<4x100xf32>
    %22 = arith.addf %13, %21 : vector<4x100xf32>
    %c0_i32_5 = arith.constant 0 : i32
    %23 = arith.addi %0, %c0_i32_5 : i32
    %c2_i32 = arith.constant 2 : i32
    %24 = arith.addi %23, %c2_i32 : i32
    %25 = arith.index_cast %24 : i32 to index
    %26 = memref.load %arg2[%25] : memref<432xf32, #tpu.memory_space<smem>>
    %27 = vector.extract_strided_slice %4 {offsets = [2, 0, 0], sizes = [1, 4, 100], strides = [1, 1, 1]} : vector<4x4x100xf32> to vector<1x4x100xf32>
    %28 = vector.shape_cast %27 : vector<1x4x100xf32> to vector<4x100xf32>
    %29 = vector.broadcast %26 : f32 to vector<4x100xf32>
    %30 = arith.mulf %29, %28 : vector<4x100xf32>
    %31 = arith.addf %22, %30 : vector<4x100xf32>
    %c0_i32_6 = arith.constant 0 : i32
    %32 = arith.addi %0, %c0_i32_6 : i32
    %c3_i32 = arith.constant 3 : i32
    %33 = arith.addi %32, %c3_i32 : i32
    %34 = arith.index_cast %33 : i32 to index
    %35 = memref.load %arg2[%34] : memref<432xf32, #tpu.memory_space<smem>>
    %36 = vector.extract_strided_slice %4 {offsets = [3, 0, 0], sizes = [1, 4, 100], strides = [1, 1, 1]} : vector<4x4x100xf32> to vector<1x4x100xf32>
    %37 = vector.shape_cast %36 : vector<1x4x100xf32> to vector<4x100xf32>
    %38 = vector.broadcast %35 : f32 to vector<4x100xf32>
    %39 = arith.mulf %38, %37 : vector<4x100xf32>
    %40 = arith.addf %31, %39 : vector<4x100xf32>
    %c99_i32 = arith.constant 99 : i32
    %41 = tpu.dynamic_rotate %4 by %c99_i32 dim 2 : vector<4x4x100xf32>, i32 -> vector<4x4x100xf32>
    %c4_i32 = arith.constant 4 : i32
    %42 = arith.addi %0, %c4_i32 : i32
    %c0_i32_7 = arith.constant 0 : i32
    %43 = arith.addi %42, %c0_i32_7 : i32
    %44 = arith.index_cast %43 : i32 to index
    %45 = memref.load %arg2[%44] : memref<432xf32, #tpu.memory_space<smem>>
    %46 = vector.extract_strided_slice %41 {offsets = [0, 0, 0], sizes = [1, 4, 100], strides = [1, 1, 1]} : vector<4x4x100xf32> to vector<1x4x100xf32>
    %47 = vector.shape_cast %46 : vector<1x4x100xf32> to vector<4x100xf32>
    %48 = vector.broadcast %45 : f32 to vector<4x100xf32>
    %49 = arith.mulf %48, %47 : vector<4x100xf32>
    %50 = arith.addf %40, %49 : vector<4x100xf32>
    %c4_i32_8 = arith.constant 4 : i32
    %51 = arith.addi %0, %c4_i32_8 : i32
    %c1_i32_9 = arith.constant 1 : i32
    %52 = arith.addi %51, %c1_i32_9 : i32
    %53 = arith.index_cast %52 : i32 to index
    %54 = memref.load %arg2[%53] : memref<432xf32, #tpu.memory_space<smem>>
    %55 = vector.extract_strided_slice %41 {offsets = [1, 0, 0], sizes = [1, 4, 100], strides = [1, 1, 1]} : vector<4x4x100xf32> to vector<1x4x100xf32>
    %56 = vector.shape_cast %55 : vector<1x4x100xf32> to vector<4x100xf32>
    %57 = vector.broadcast %54 : f32 to vector<4x100xf32>
    %58 = arith.mulf %57, %56 : vector<4x100xf32>
    %59 = arith.addf %50, %58 : vector<4x100xf32>
    %c4_i32_10 = arith.constant 4 : i32
    %60 = arith.addi %0, %c4_i32_10 : i32
    %c2_i32_11 = arith.constant 2 : i32
    %61 = arith.addi %60, %c2_i32_11 : i32
    %62 = arith.index_cast %61 : i32 to index
    %63 = memref.load %arg2[%62] : memref<432xf32, #tpu.memory_space<smem>>
    %64 = vector.extract_strided_slice %41 {offsets = [2, 0, 0], sizes = [1, 4, 100], strides = [1, 1, 1]} : vector<4x4x100xf32> to vector<1x4x100xf32>
    %65 = vector.shape_cast %64 : vector<1x4x100xf32> to vector<4x100xf32>
    %66 = vector.broadcast %63 : f32 to vector<4x100xf32>
    %67 = arith.mulf %66, %65 : vector<4x100xf32>
    %68 = arith.addf %59, %67 : vector<4x100xf32>
    %c4_i32_12 = arith.constant 4 : i32
    %69 = arith.addi %0, %c4_i32_12 : i32
    %c3_i32_13 = arith.constant 3 : i32
    %70 = arith.addi %69, %c3_i32_13 : i32
    %71 = arith.index_cast %70 : i32 to index
    %72 = memref.load %arg2[%71] : memref<432xf32, #tpu.memory_space<smem>>
    %73 = vector.extract_strided_slice %41 {offsets = [3, 0, 0], sizes = [1, 4, 100], strides = [1, 1, 1]} : vector<4x4x100xf32> to vector<1x4x100xf32>
    %74 = vector.shape_cast %73 : vector<1x4x100xf32> to vector<4x100xf32>
    %75 = vector.broadcast %72 : f32 to vector<4x100xf32>
    %76 = arith.mulf %75, %74 : vector<4x100xf32>
    %77 = arith.addf %68, %76 : vector<4x100xf32>
    %c98_i32 = arith.constant 98 : i32
    %78 = tpu.dynamic_rotate %4 by %c98_i32 dim 2 : vector<4x4x100xf32>, i32 -> vector<4x4x100xf32>
    %c8_i32 = arith.constant 8 : i32
    %79 = arith.addi %0, %c8_i32 : i32
    %c0_i32_14 = arith.constant 0 : i32
    %80 = arith.addi %79, %c0_i32_14 : i32
    %81 = arith.index_cast %80 : i32 to index
    %82 = memref.load %arg2[%81] : memref<432xf32, #tpu.memory_space<smem>>
    %83 = vector.extract_strided_slice %78 {offsets = [0, 0, 0], sizes = [1, 4, 100], strides = [1, 1, 1]} : vector<4x4x100xf32> to vector<1x4x100xf32>
    %84 = vector.shape_cast %83 : vector<1x4x100xf32> to vector<4x100xf32>
    %85 = vector.broadcast %82 : f32 to vector<4x100xf32>
    %86 = arith.mulf %85, %84 : vector<4x100xf32>
    %87 = arith.addf %77, %86 : vector<4x100xf32>
    %c8_i32_15 = arith.constant 8 : i32
    %88 = arith.addi %0, %c8_i32_15 : i32
    %c1_i32_16 = arith.constant 1 : i32
    %89 = arith.addi %88, %c1_i32_16 : i32
    %90 = arith.index_cast %89 : i32 to index
    %91 = memref.load %arg2[%90] : memref<432xf32, #tpu.memory_space<smem>>
    %92 = vector.extract_strided_slice %78 {offsets = [1, 0, 0], sizes = [1, 4, 100], strides = [1, 1, 1]} : vector<4x4x100xf32> to vector<1x4x100xf32>
    %93 = vector.shape_cast %92 : vector<1x4x100xf32> to vector<4x100xf32>
    %94 = vector.broadcast %91 : f32 to vector<4x100xf32>
    %95 = arith.mulf %94, %93 : vector<4x100xf32>
    %96 = arith.addf %87, %95 : vector<4x100xf32>
    %c8_i32_17 = arith.constant 8 : i32
    %97 = arith.addi %0, %c8_i32_17 : i32
    %c2_i32_18 = arith.constant 2 : i32
    %98 = arith.addi %97, %c2_i32_18 : i32
    %99 = arith.index_cast %98 : i32 to index
    %100 = memref.load %arg2[%99] : memref<432xf32, #tpu.memory_space<smem>>
    %101 = vector.extract_strided_slice %78 {offsets = [2, 0, 0], sizes = [1, 4, 100], strides = [1, 1, 1]} : vector<4x4x100xf32> to vector<1x4x100xf32>
    %102 = vector.shape_cast %101 : vector<1x4x100xf32> to vector<4x100xf32>
    %103 = vector.broadcast %100 : f32 to vector<4x100xf32>
    %104 = arith.mulf %103, %102 : vector<4x100xf32>
    %105 = arith.addf %96, %104 : vector<4x100xf32>
    %c8_i32_19 = arith.constant 8 : i32
    %106 = arith.addi %0, %c8_i32_19 : i32
    %c3_i32_20 = arith.constant 3 : i32
    %107 = arith.addi %106, %c3_i32_20 : i32
    %108 = arith.index_cast %107 : i32 to index
    %109 = memref.load %arg2[%108] : memref<432xf32, #tpu.memory_space<smem>>
    %110 = vector.extract_strided_slice %78 {offsets = [3, 0, 0], sizes = [1, 4, 100], strides = [1, 1, 1]} : vector<4x4x100xf32> to vector<1x4x100xf32>
    %111 = vector.shape_cast %110 : vector<1x4x100xf32> to vector<4x100xf32>
    %112 = vector.broadcast %109 : f32 to vector<4x100xf32>
    %113 = arith.mulf %112, %111 : vector<4x100xf32>
    %114 = arith.addf %105, %113 : vector<4x100xf32>
    %c90_i32 = arith.constant 90 : i32
    %115 = tpu.dynamic_rotate %4 by %c90_i32 dim 2 : vector<4x4x100xf32>, i32 -> vector<4x4x100xf32>
    %c12_i32 = arith.constant 12 : i32
    %116 = arith.addi %0, %c12_i32 : i32
    %c0_i32_21 = arith.constant 0 : i32
    %117 = arith.addi %116, %c0_i32_21 : i32
    %118 = arith.index_cast %117 : i32 to index
    %119 = memref.load %arg2[%118] : memref<432xf32, #tpu.memory_space<smem>>
    %120 = vector.extract_strided_slice %115 {offsets = [0, 0, 0], sizes = [1, 4, 100], strides = [1, 1, 1]} : vector<4x4x100xf32> to vector<1x4x100xf32>
    %121 = vector.shape_cast %120 : vector<1x4x100xf32> to vector<4x100xf32>
    %122 = vector.broadcast %119 : f32 to vector<4x100xf32>
    %123 = arith.mulf %122, %121 : vector<4x100xf32>
    %124 = arith.addf %114, %123 : vector<4x100xf32>
    %c12_i32_22 = arith.constant 12 : i32
    %125 = arith.addi %0, %c12_i32_22 : i32
    %c1_i32_23 = arith.constant 1 : i32
    %126 = arith.addi %125, %c1_i32_23 : i32
    %127 = arith.index_cast %126 : i32 to index
    %128 = memref.load %arg2[%127] : memref<432xf32, #tpu.memory_space<smem>>
    %129 = vector.extract_strided_slice %115 {offsets = [1, 0, 0], sizes = [1, 4, 100], strides = [1, 1, 1]} : vector<4x4x100xf32> to vector<1x4x100xf32>
    %130 = vector.shape_cast %129 : vector<1x4x100xf32> to vector<4x100xf32>
    %131 = vector.broadcast %128 : f32 to vector<4x100xf32>
    %132 = arith.mulf %131, %130 : vector<4x100xf32>
    %133 = arith.addf %124, %132 : vector<4x100xf32>
    %c12_i32_24 = arith.constant 12 : i32
    %134 = arith.addi %0, %c12_i32_24 : i32
    %c2_i32_25 = arith.constant 2 : i32
    %135 = arith.addi %134, %c2_i32_25 : i32
    %136 = arith.index_cast %135 : i32 to index
    %137 = memref.load %arg2[%136] : memref<432xf32, #tpu.memory_space<smem>>
    %138 = vector.extract_strided_slice %115 {offsets = [2, 0, 0], sizes = [1, 4, 100], strides = [1, 1, 1]} : vector<4x4x100xf32> to vector<1x4x100xf32>
    %139 = vector.shape_cast %138 : vector<1x4x100xf32> to vector<4x100xf32>
    %140 = vector.broadcast %137 : f32 to vector<4x100xf32>
    %141 = arith.mulf %140, %139 : vector<4x100xf32>
    %142 = arith.addf %133, %141 : vector<4x100xf32>
    %c12_i32_26 = arith.constant 12 : i32
    %143 = arith.addi %0, %c12_i32_26 : i32
    %c3_i32_27 = arith.constant 3 : i32
    %144 = arith.addi %143, %c3_i32_27 : i32
    %145 = arith.index_cast %144 : i32 to index
    %146 = memref.load %arg2[%145] : memref<432xf32, #tpu.memory_space<smem>>
    %147 = vector.extract_strided_slice %115 {offsets = [3, 0, 0], sizes = [1, 4, 100], strides = [1, 1, 1]} : vector<4x4x100xf32> to vector<1x4x100xf32>
    %148 = vector.shape_cast %147 : vector<1x4x100xf32> to vector<4x100xf32>
    %149 = vector.broadcast %146 : f32 to vector<4x100xf32>
    %150 = arith.mulf %149, %148 : vector<4x100xf32>
    %151 = arith.addf %142, %150 : vector<4x100xf32>
    %c89_i32 = arith.constant 89 : i32
    %152 = tpu.dynamic_rotate %4 by %c89_i32 dim 2 : vector<4x4x100xf32>, i32 -> vector<4x4x100xf32>
    %c16_i32 = arith.constant 16 : i32
    %153 = arith.addi %0, %c16_i32 : i32
    %c0_i32_28 = arith.constant 0 : i32
    %154 = arith.addi %153, %c0_i32_28 : i32
    %155 = arith.index_cast %154 : i32 to index
    %156 = memref.load %arg2[%155] : memref<432xf32, #tpu.memory_space<smem>>
    %157 = vector.extract_strided_slice %152 {offsets = [0, 0, 0], sizes = [1, 4, 100], strides = [1, 1, 1]} : vector<4x4x100xf32> to vector<1x4x100xf32>
    %158 = vector.shape_cast %157 : vector<1x4x100xf32> to vector<4x100xf32>
    %159 = vector.broadcast %156 : f32 to vector<4x100xf32>
    %160 = arith.mulf %159, %158 : vector<4x100xf32>
    %161 = arith.addf %151, %160 : vector<4x100xf32>
    %c16_i32_29 = arith.constant 16 : i32
    %162 = arith.addi %0, %c16_i32_29 : i32
    %c1_i32_30 = arith.constant 1 : i32
    %163 = arith.addi %162, %c1_i32_30 : i32
    %164 = arith.index_cast %163 : i32 to index
    %165 = memref.load %arg2[%164] : memref<432xf32, #tpu.memory_space<smem>>
    %166 = vector.extract_strided_slice %152 {offsets = [1, 0, 0], sizes = [1, 4, 100], strides = [1, 1, 1]} : vector<4x4x100xf32> to vector<1x4x100xf32>
    %167 = vector.shape_cast %166 : vector<1x4x100xf32> to vector<4x100xf32>
    %168 = vector.broadcast %165 : f32 to vector<4x100xf32>
    %169 = arith.mulf %168, %167 : vector<4x100xf32>
    %170 = arith.addf %161, %169 : vector<4x100xf32>
    %c16_i32_31 = arith.constant 16 : i32
    %171 = arith.addi %0, %c16_i32_31 : i32
    %c2_i32_32 = arith.constant 2 : i32
    %172 = arith.addi %171, %c2_i32_32 : i32
    %173 = arith.index_cast %172 : i32 to index
    %174 = memref.load %arg2[%173] : memref<432xf32, #tpu.memory_space<smem>>
    %175 = vector.extract_strided_slice %152 {offsets = [2, 0, 0], sizes = [1, 4, 100], strides = [1, 1, 1]} : vector<4x4x100xf32> to vector<1x4x100xf32>
    %176 = vector.shape_cast %175 : vector<1x4x100xf32> to vector<4x100xf32>
    %177 = vector.broadcast %174 : f32 to vector<4x100xf32>
    %178 = arith.mulf %177, %176 : vector<4x100xf32>
    %179 = arith.addf %170, %178 : vector<4x100xf32>
    %c16_i32_33 = arith.constant 16 : i32
    %180 = arith.addi %0, %c16_i32_33 : i32
    %c3_i32_34 = arith.constant 3 : i32
    %181 = arith.addi %180, %c3_i32_34 : i32
    %182 = arith.index_cast %181 : i32 to index
    %183 = memref.load %arg2[%182] : memref<432xf32, #tpu.memory_space<smem>>
    %184 = vector.extract_strided_slice %152 {offsets = [3, 0, 0], sizes = [1, 4, 100], strides = [1, 1, 1]} : vector<4x4x100xf32> to vector<1x4x100xf32>
    %185 = vector.shape_cast %184 : vector<1x4x100xf32> to vector<4x100xf32>
    %186 = vector.broadcast %183 : f32 to vector<4x100xf32>
    %187 = arith.mulf %186, %185 : vector<4x100xf32>
    %188 = arith.addf %179, %187 : vector<4x100xf32>
    %c88_i32 = arith.constant 88 : i32
    %189 = tpu.dynamic_rotate %4 by %c88_i32 dim 2 : vector<4x4x100xf32>, i32 -> vector<4x4x100xf32>
    %c20_i32 = arith.constant 20 : i32
    %190 = arith.addi %0, %c20_i32 : i32
    %c0_i32_35 = arith.constant 0 : i32
    %191 = arith.addi %190, %c0_i32_35 : i32
    %192 = arith.index_cast %191 : i32 to index
    %193 = memref.load %arg2[%192] : memref<432xf32, #tpu.memory_space<smem>>
    %194 = vector.extract_strided_slice %189 {offsets = [0, 0, 0], sizes = [1, 4, 100], strides = [1, 1, 1]} : vector<4x4x100xf32> to vector<1x4x100xf32>
    %195 = vector.shape_cast %194 : vector<1x4x100xf32> to vector<4x100xf32>
    %196 = vector.broadcast %193 : f32 to vector<4x100xf32>
    %197 = arith.mulf %196, %195 : vector<4x100xf32>
    %198 = arith.addf %188, %197 : vector<4x100xf32>
    %c20_i32_36 = arith.constant 20 : i32
    %199 = arith.addi %0, %c20_i32_36 : i32
    %c1_i32_37 = arith.constant 1 : i32
    %200 = arith.addi %199, %c1_i32_37 : i32
    %201 = arith.index_cast %200 : i32 to index
    %202 = memref.load %arg2[%201] : memref<432xf32, #tpu.memory_space<smem>>
    %203 = vector.extract_strided_slice %189 {offsets = [1, 0, 0], sizes = [1, 4, 100], strides = [1, 1, 1]} : vector<4x4x100xf32> to vector<1x4x100xf32>
    %204 = vector.shape_cast %203 : vector<1x4x100xf32> to vector<4x100xf32>
    %205 = vector.broadcast %202 : f32 to vector<4x100xf32>
    %206 = arith.mulf %205, %204 : vector<4x100xf32>
    %207 = arith.addf %198, %206 : vector<4x100xf32>
    %c20_i32_38 = arith.constant 20 : i32
    %208 = arith.addi %0, %c20_i32_38 : i32
    %c2_i32_39 = arith.constant 2 : i32
    %209 = arith.addi %208, %c2_i32_39 : i32
    %210 = arith.index_cast %209 : i32 to index
    %211 = memref.load %arg2[%210] : memref<432xf32, #tpu.memory_space<smem>>
    %212 = vector.extract_strided_slice %189 {offsets = [2, 0, 0], sizes = [1, 4, 100], strides = [1, 1, 1]} : vector<4x4x100xf32> to vector<1x4x100xf32>
    %213 = vector.shape_cast %212 : vector<1x4x100xf32> to vector<4x100xf32>
    %214 = vector.broadcast %211 : f32 to vector<4x100xf32>
    %215 = arith.mulf %214, %213 : vector<4x100xf32>
    %216 = arith.addf %207, %215 : vector<4x100xf32>
    %c20_i32_40 = arith.constant 20 : i32
    %217 = arith.addi %0, %c20_i32_40 : i32
    %c3_i32_41 = arith.constant 3 : i32
    %218 = arith.addi %217, %c3_i32_41 : i32
    %219 = arith.index_cast %218 : i32 to index
    %220 = memref.load %arg2[%219] : memref<432xf32, #tpu.memory_space<smem>>
    %221 = vector.extract_strided_slice %189 {offsets = [3, 0, 0], sizes = [1, 4, 100], strides = [1, 1, 1]} : vector<4x4x100xf32> to vector<1x4x100xf32>
    %222 = vector.shape_cast %221 : vector<1x4x100xf32> to vector<4x100xf32>
    %223 = vector.broadcast %220 : f32 to vector<4x100xf32>
    %224 = arith.mulf %223, %222 : vector<4x100xf32>
    %225 = arith.addf %216, %224 : vector<4x100xf32>
    %c80_i32 = arith.constant 80 : i32
    %226 = tpu.dynamic_rotate %4 by %c80_i32 dim 2 : vector<4x4x100xf32>, i32 -> vector<4x4x100xf32>
    %c24_i32 = arith.constant 24 : i32
    %227 = arith.addi %0, %c24_i32 : i32
    %c0_i32_42 = arith.constant 0 : i32
    %228 = arith.addi %227, %c0_i32_42 : i32
    %229 = arith.index_cast %228 : i32 to index
    %230 = memref.load %arg2[%229] : memref<432xf32, #tpu.memory_space<smem>>
    %231 = vector.extract_strided_slice %226 {offsets = [0, 0, 0], sizes = [1, 4, 100], strides = [1, 1, 1]} : vector<4x4x100xf32> to vector<1x4x100xf32>
    %232 = vector.shape_cast %231 : vector<1x4x100xf32> to vector<4x100xf32>
    %233 = vector.broadcast %230 : f32 to vector<4x100xf32>
    %234 = arith.mulf %233, %232 : vector<4x100xf32>
    %235 = arith.addf %225, %234 : vector<4x100xf32>
    %c24_i32_43 = arith.constant 24 : i32
    %236 = arith.addi %0, %c24_i32_43 : i32
    %c1_i32_44 = arith.constant 1 : i32
    %237 = arith.addi %236, %c1_i32_44 : i32
    %238 = arith.index_cast %237 : i32 to index
    %239 = memref.load %arg2[%238] : memref<432xf32, #tpu.memory_space<smem>>
    %240 = vector.extract_strided_slice %226 {offsets = [1, 0, 0], sizes = [1, 4, 100], strides = [1, 1, 1]} : vector<4x4x100xf32> to vector<1x4x100xf32>
    %241 = vector.shape_cast %240 : vector<1x4x100xf32> to vector<4x100xf32>
    %242 = vector.broadcast %239 : f32 to vector<4x100xf32>
    %243 = arith.mulf %242, %241 : vector<4x100xf32>
    %244 = arith.addf %235, %243 : vector<4x100xf32>
    %c24_i32_45 = arith.constant 24 : i32
    %245 = arith.addi %0, %c24_i32_45 : i32
    %c2_i32_46 = arith.constant 2 : i32
    %246 = arith.addi %245, %c2_i32_46 : i32
    %247 = arith.index_cast %246 : i32 to index
    %248 = memref.load %arg2[%247] : memref<432xf32, #tpu.memory_space<smem>>
    %249 = vector.extract_strided_slice %226 {offsets = [2, 0, 0], sizes = [1, 4, 100], strides = [1, 1, 1]} : vector<4x4x100xf32> to vector<1x4x100xf32>
    %250 = vector.shape_cast %249 : vector<1x4x100xf32> to vector<4x100xf32>
    %251 = vector.broadcast %248 : f32 to vector<4x100xf32>
    %252 = arith.mulf %251, %250 : vector<4x100xf32>
    %253 = arith.addf %244, %252 : vector<4x100xf32>
    %c24_i32_47 = arith.constant 24 : i32
    %254 = arith.addi %0, %c24_i32_47 : i32
    %c3_i32_48 = arith.constant 3 : i32
    %255 = arith.addi %254, %c3_i32_48 : i32
    %256 = arith.index_cast %255 : i32 to index
    %257 = memref.load %arg2[%256] : memref<432xf32, #tpu.memory_space<smem>>
    %258 = vector.extract_strided_slice %226 {offsets = [3, 0, 0], sizes = [1, 4, 100], strides = [1, 1, 1]} : vector<4x4x100xf32> to vector<1x4x100xf32>
    %259 = vector.shape_cast %258 : vector<1x4x100xf32> to vector<4x100xf32>
    %260 = vector.broadcast %257 : f32 to vector<4x100xf32>
    %261 = arith.mulf %260, %259 : vector<4x100xf32>
    %262 = arith.addf %253, %261 : vector<4x100xf32>
    %c79_i32 = arith.constant 79 : i32
    %263 = tpu.dynamic_rotate %4 by %c79_i32 dim 2 : vector<4x4x100xf32>, i32 -> vector<4x4x100xf32>
    %c28_i32 = arith.constant 28 : i32
    %264 = arith.addi %0, %c28_i32 : i32
    %c0_i32_49 = arith.constant 0 : i32
    %265 = arith.addi %264, %c0_i32_49 : i32
    %266 = arith.index_cast %265 : i32 to index
    %267 = memref.load %arg2[%266] : memref<432xf32, #tpu.memory_space<smem>>
    %268 = vector.extract_strided_slice %263 {offsets = [0, 0, 0], sizes = [1, 4, 100], strides = [1, 1, 1]} : vector<4x4x100xf32> to vector<1x4x100xf32>
    %269 = vector.shape_cast %268 : vector<1x4x100xf32> to vector<4x100xf32>
    %270 = vector.broadcast %267 : f32 to vector<4x100xf32>
    %271 = arith.mulf %270, %269 : vector<4x100xf32>
    %272 = arith.addf %262, %271 : vector<4x100xf32>
    %c28_i32_50 = arith.constant 28 : i32
    %273 = arith.addi %0, %c28_i32_50 : i32
    %c1_i32_51 = arith.constant 1 : i32
    %274 = arith.addi %273, %c1_i32_51 : i32
    %275 = arith.index_cast %274 : i32 to index
    %276 = memref.load %arg2[%275] : memref<432xf32, #tpu.memory_space<smem>>
    %277 = vector.extract_strided_slice %263 {offsets = [1, 0, 0], sizes = [1, 4, 100], strides = [1, 1, 1]} : vector<4x4x100xf32> to vector<1x4x100xf32>
    %278 = vector.shape_cast %277 : vector<1x4x100xf32> to vector<4x100xf32>
    %279 = vector.broadcast %276 : f32 to vector<4x100xf32>
    %280 = arith.mulf %279, %278 : vector<4x100xf32>
    %281 = arith.addf %272, %280 : vector<4x100xf32>
    %c28_i32_52 = arith.constant 28 : i32
    %282 = arith.addi %0, %c28_i32_52 : i32
    %c2_i32_53 = arith.constant 2 : i32
    %283 = arith.addi %282, %c2_i32_53 : i32
    %284 = arith.index_cast %283 : i32 to index
    %285 = memref.load %arg2[%284] : memref<432xf32, #tpu.memory_space<smem>>
    %286 = vector.extract_strided_slice %263 {offsets = [2, 0, 0], sizes = [1, 4, 100], strides = [1, 1, 1]} : vector<4x4x100xf32> to vector<1x4x100xf32>
    %287 = vector.shape_cast %286 : vector<1x4x100xf32> to vector<4x100xf32>
    %288 = vector.broadcast %285 : f32 to vector<4x100xf32>
    %289 = arith.mulf %288, %287 : vector<4x100xf32>
    %290 = arith.addf %281, %289 : vector<4x100xf32>
    %c28_i32_54 = arith.constant 28 : i32
    %291 = arith.addi %0, %c28_i32_54 : i32
    %c3_i32_55 = arith.constant 3 : i32
    %292 = arith.addi %291, %c3_i32_55 : i32
    %293 = arith.index_cast %292 : i32 to index
    %294 = memref.load %arg2[%293] : memref<432xf32, #tpu.memory_space<smem>>
    %295 = vector.extract_strided_slice %263 {offsets = [3, 0, 0], sizes = [1, 4, 100], strides = [1, 1, 1]} : vector<4x4x100xf32> to vector<1x4x100xf32>
    %296 = vector.shape_cast %295 : vector<1x4x100xf32> to vector<4x100xf32>
    %297 = vector.broadcast %294 : f32 to vector<4x100xf32>
    %298 = arith.mulf %297, %296 : vector<4x100xf32>
    %299 = arith.addf %290, %298 : vector<4x100xf32>
    %c78_i32 = arith.constant 78 : i32
    %300 = tpu.dynamic_rotate %4 by %c78_i32 dim 2 : vector<4x4x100xf32>, i32 -> vector<4x4x100xf32>
    %c32_i32 = arith.constant 32 : i32
    %301 = arith.addi %0, %c32_i32 : i32
    %c0_i32_56 = arith.constant 0 : i32
    %302 = arith.addi %301, %c0_i32_56 : i32
    %303 = arith.index_cast %302 : i32 to index
    %304 = memref.load %arg2[%303] : memref<432xf32, #tpu.memory_space<smem>>
    %305 = vector.extract_strided_slice %300 {offsets = [0, 0, 0], sizes = [1, 4, 100], strides = [1, 1, 1]} : vector<4x4x100xf32> to vector<1x4x100xf32>
    %306 = vector.shape_cast %305 : vector<1x4x100xf32> to vector<4x100xf32>
    %307 = vector.broadcast %304 : f32 to vector<4x100xf32>
    %308 = arith.mulf %307, %306 : vector<4x100xf32>
    %309 = arith.addf %299, %308 : vector<4x100xf32>
    %c32_i32_57 = arith.constant 32 : i32
    %310 = arith.addi %0, %c32_i32_57 : i32
    %c1_i32_58 = arith.constant 1 : i32
    %311 = arith.addi %310, %c1_i32_58 : i32
    %312 = arith.index_cast %311 : i32 to index
    %313 = memref.load %arg2[%312] : memref<432xf32, #tpu.memory_space<smem>>
    %314 = vector.extract_strided_slice %300 {offsets = [1, 0, 0], sizes = [1, 4, 100], strides = [1, 1, 1]} : vector<4x4x100xf32> to vector<1x4x100xf32>
    %315 = vector.shape_cast %314 : vector<1x4x100xf32> to vector<4x100xf32>
    %316 = vector.broadcast %313 : f32 to vector<4x100xf32>
    %317 = arith.mulf %316, %315 : vector<4x100xf32>
    %318 = arith.addf %309, %317 : vector<4x100xf32>
    %c32_i32_59 = arith.constant 32 : i32
    %319 = arith.addi %0, %c32_i32_59 : i32
    %c2_i32_60 = arith.constant 2 : i32
    %320 = arith.addi %319, %c2_i32_60 : i32
    %321 = arith.index_cast %320 : i32 to index
    %322 = memref.load %arg2[%321] : memref<432xf32, #tpu.memory_space<smem>>
    %323 = vector.extract_strided_slice %300 {offsets = [2, 0, 0], sizes = [1, 4, 100], strides = [1, 1, 1]} : vector<4x4x100xf32> to vector<1x4x100xf32>
    %324 = vector.shape_cast %323 : vector<1x4x100xf32> to vector<4x100xf32>
    %325 = vector.broadcast %322 : f32 to vector<4x100xf32>
    %326 = arith.mulf %325, %324 : vector<4x100xf32>
    %327 = arith.addf %318, %326 : vector<4x100xf32>
    %c32_i32_61 = arith.constant 32 : i32
    %328 = arith.addi %0, %c32_i32_61 : i32
    %c3_i32_62 = arith.constant 3 : i32
    %329 = arith.addi %328, %c3_i32_62 : i32
    %330 = arith.index_cast %329 : i32 to index
    %331 = memref.load %arg2[%330] : memref<432xf32, #tpu.memory_space<smem>>
    %332 = vector.extract_strided_slice %300 {offsets = [3, 0, 0], sizes = [1, 4, 100], strides = [1, 1, 1]} : vector<4x4x100xf32> to vector<1x4x100xf32>
    %333 = vector.shape_cast %332 : vector<1x4x100xf32> to vector<4x100xf32>
    %334 = vector.broadcast %331 : f32 to vector<4x100xf32>
    %335 = arith.mulf %334, %333 : vector<4x100xf32>
    %336 = arith.addf %327, %335 : vector<4x100xf32>
    %337 = vector.extract_strided_slice %2 {offsets = [0, 1, 0], sizes = [4, 4, 100], strides = [1, 1, 1]} : vector<4x6x100xf32> to vector<4x4x100xf32>
    %c36_i32 = arith.constant 36 : i32
    %338 = arith.addi %0, %c36_i32 : i32
    %c0_i32_63 = arith.constant 0 : i32
    %339 = arith.addi %338, %c0_i32_63 : i32
    %340 = arith.index_cast %339 : i32 to index
    %341 = memref.load %arg2[%340] : memref<432xf32, #tpu.memory_space<smem>>
    %342 = vector.extract_strided_slice %337 {offsets = [0, 0, 0], sizes = [1, 4, 100], strides = [1, 1, 1]} : vector<4x4x100xf32> to vector<1x4x100xf32>
    %343 = vector.shape_cast %342 : vector<1x4x100xf32> to vector<4x100xf32>
    %344 = vector.broadcast %341 : f32 to vector<4x100xf32>
    %345 = arith.mulf %344, %343 : vector<4x100xf32>
    %346 = arith.addf %336, %345 : vector<4x100xf32>
    %c36_i32_64 = arith.constant 36 : i32
    %347 = arith.addi %0, %c36_i32_64 : i32
    %c1_i32_65 = arith.constant 1 : i32
    %348 = arith.addi %347, %c1_i32_65 : i32
    %349 = arith.index_cast %348 : i32 to index
    %350 = memref.load %arg2[%349] : memref<432xf32, #tpu.memory_space<smem>>
    %351 = vector.extract_strided_slice %337 {offsets = [1, 0, 0], sizes = [1, 4, 100], strides = [1, 1, 1]} : vector<4x4x100xf32> to vector<1x4x100xf32>
    %352 = vector.shape_cast %351 : vector<1x4x100xf32> to vector<4x100xf32>
    %353 = vector.broadcast %350 : f32 to vector<4x100xf32>
    %354 = arith.mulf %353, %352 : vector<4x100xf32>
    %355 = arith.addf %346, %354 : vector<4x100xf32>
    %c36_i32_66 = arith.constant 36 : i32
    %356 = arith.addi %0, %c36_i32_66 : i32
    %c2_i32_67 = arith.constant 2 : i32
    %357 = arith.addi %356, %c2_i32_67 : i32
    %358 = arith.index_cast %357 : i32 to index
    %359 = memref.load %arg2[%358] : memref<432xf32, #tpu.memory_space<smem>>
    %360 = vector.extract_strided_slice %337 {offsets = [2, 0, 0], sizes = [1, 4, 100], strides = [1, 1, 1]} : vector<4x4x100xf32> to vector<1x4x100xf32>
    %361 = vector.shape_cast %360 : vector<1x4x100xf32> to vector<4x100xf32>
    %362 = vector.broadcast %359 : f32 to vector<4x100xf32>
    %363 = arith.mulf %362, %361 : vector<4x100xf32>
    %364 = arith.addf %355, %363 : vector<4x100xf32>
    %c36_i32_68 = arith.constant 36 : i32
    %365 = arith.addi %0, %c36_i32_68 : i32
    %c3_i32_69 = arith.constant 3 : i32
    %366 = arith.addi %365, %c3_i32_69 : i32
    %367 = arith.index_cast %366 : i32 to index
    %368 = memref.load %arg2[%367] : memref<432xf32, #tpu.memory_space<smem>>
    %369 = vector.extract_strided_slice %337 {offsets = [3, 0, 0], sizes = [1, 4, 100], strides = [1, 1, 1]} : vector<4x4x100xf32> to vector<1x4x100xf32>
    %370 = vector.shape_cast %369 : vector<1x4x100xf32> to vector<4x100xf32>
    %371 = vector.broadcast %368 : f32 to vector<4x100xf32>
    %372 = arith.mulf %371, %370 : vector<4x100xf32>
    %373 = arith.addf %364, %372 : vector<4x100xf32>
    %c99_i32_70 = arith.constant 99 : i32
    %374 = tpu.dynamic_rotate %337 by %c99_i32_70 dim 2 : vector<4x4x100xf32>, i32 -> vector<4x4x100xf32>
    %c40_i32 = arith.constant 40 : i32
    %375 = arith.addi %0, %c40_i32 : i32
    %c0_i32_71 = arith.constant 0 : i32
    %376 = arith.addi %375, %c0_i32_71 : i32
    %377 = arith.index_cast %376 : i32 to index
    %378 = memref.load %arg2[%377] : memref<432xf32, #tpu.memory_space<smem>>
    %379 = vector.extract_strided_slice %374 {offsets = [0, 0, 0], sizes = [1, 4, 100], strides = [1, 1, 1]} : vector<4x4x100xf32> to vector<1x4x100xf32>
    %380 = vector.shape_cast %379 : vector<1x4x100xf32> to vector<4x100xf32>
    %381 = vector.broadcast %378 : f32 to vector<4x100xf32>
    %382 = arith.mulf %381, %380 : vector<4x100xf32>
    %383 = arith.addf %373, %382 : vector<4x100xf32>
    %c40_i32_72 = arith.constant 40 : i32
    %384 = arith.addi %0, %c40_i32_72 : i32
    %c1_i32_73 = arith.constant 1 : i32
    %385 = arith.addi %384, %c1_i32_73 : i32
    %386 = arith.index_cast %385 : i32 to index
    %387 = memref.load %arg2[%386] : memref<432xf32, #tpu.memory_space<smem>>
    %388 = vector.extract_strided_slice %374 {offsets = [1, 0, 0], sizes = [1, 4, 100], strides = [1, 1, 1]} : vector<4x4x100xf32> to vector<1x4x100xf32>
    %389 = vector.shape_cast %388 : vector<1x4x100xf32> to vector<4x100xf32>
    %390 = vector.broadcast %387 : f32 to vector<4x100xf32>
    %391 = arith.mulf %390, %389 : vector<4x100xf32>
    %392 = arith.addf %383, %391 : vector<4x100xf32>
    %c40_i32_74 = arith.constant 40 : i32
    %393 = arith.addi %0, %c40_i32_74 : i32
    %c2_i32_75 = arith.constant 2 : i32
    %394 = arith.addi %393, %c2_i32_75 : i32
    %395 = arith.index_cast %394 : i32 to index
    %396 = memref.load %arg2[%395] : memref<432xf32, #tpu.memory_space<smem>>
    %397 = vector.extract_strided_slice %374 {offsets = [2, 0, 0], sizes = [1, 4, 100], strides = [1, 1, 1]} : vector<4x4x100xf32> to vector<1x4x100xf32>
    %398 = vector.shape_cast %397 : vector<1x4x100xf32> to vector<4x100xf32>
    %399 = vector.broadcast %396 : f32 to vector<4x100xf32>
    %400 = arith.mulf %399, %398 : vector<4x100xf32>
    %401 = arith.addf %392, %400 : vector<4x100xf32>
    %c40_i32_76 = arith.constant 40 : i32
    %402 = arith.addi %0, %c40_i32_76 : i32
    %c3_i32_77 = arith.constant 3 : i32
    %403 = arith.addi %402, %c3_i32_77 : i32
    %404 = arith.index_cast %403 : i32 to index
    %405 = memref.load %arg2[%404] : memref<432xf32, #tpu.memory_space<smem>>
    %406 = vector.extract_strided_slice %374 {offsets = [3, 0, 0], sizes = [1, 4, 100], strides = [1, 1, 1]} : vector<4x4x100xf32> to vector<1x4x100xf32>
    %407 = vector.shape_cast %406 : vector<1x4x100xf32> to vector<4x100xf32>
    %408 = vector.broadcast %405 : f32 to vector<4x100xf32>
    %409 = arith.mulf %408, %407 : vector<4x100xf32>
    %410 = arith.addf %401, %409 : vector<4x100xf32>
    %c98_i32_78 = arith.constant 98 : i32
    %411 = tpu.dynamic_rotate %337 by %c98_i32_78 dim 2 : vector<4x4x100xf32>, i32 -> vector<4x4x100xf32>
    %c44_i32 = arith.constant 44 : i32
    %412 = arith.addi %0, %c44_i32 : i32
    %c0_i32_79 = arith.constant 0 : i32
    %413 = arith.addi %412, %c0_i32_79 : i32
    %414 = arith.index_cast %413 : i32 to index
    %415 = memref.load %arg2[%414] : memref<432xf32, #tpu.memory_space<smem>>
    %416 = vector.extract_strided_slice %411 {offsets = [0, 0, 0], sizes = [1, 4, 100], strides = [1, 1, 1]} : vector<4x4x100xf32> to vector<1x4x100xf32>
    %417 = vector.shape_cast %416 : vector<1x4x100xf32> to vector<4x100xf32>
    %418 = vector.broadcast %415 : f32 to vector<4x100xf32>
    %419 = arith.mulf %418, %417 : vector<4x100xf32>
    %420 = arith.addf %410, %419 : vector<4x100xf32>
    %c44_i32_80 = arith.constant 44 : i32
    %421 = arith.addi %0, %c44_i32_80 : i32
    %c1_i32_81 = arith.constant 1 : i32
    %422 = arith.addi %421, %c1_i32_81 : i32
    %423 = arith.index_cast %422 : i32 to index
    %424 = memref.load %arg2[%423] : memref<432xf32, #tpu.memory_space<smem>>
    %425 = vector.extract_strided_slice %411 {offsets = [1, 0, 0], sizes = [1, 4, 100], strides = [1, 1, 1]} : vector<4x4x100xf32> to vector<1x4x100xf32>
    %426 = vector.shape_cast %425 : vector<1x4x100xf32> to vector<4x100xf32>
    %427 = vector.broadcast %424 : f32 to vector<4x100xf32>
    %428 = arith.mulf %427, %426 : vector<4x100xf32>
    %429 = arith.addf %420, %428 : vector<4x100xf32>
    %c44_i32_82 = arith.constant 44 : i32
    %430 = arith.addi %0, %c44_i32_82 : i32
    %c2_i32_83 = arith.constant 2 : i32
    %431 = arith.addi %430, %c2_i32_83 : i32
    %432 = arith.index_cast %431 : i32 to index
    %433 = memref.load %arg2[%432] : memref<432xf32, #tpu.memory_space<smem>>
    %434 = vector.extract_strided_slice %411 {offsets = [2, 0, 0], sizes = [1, 4, 100], strides = [1, 1, 1]} : vector<4x4x100xf32> to vector<1x4x100xf32>
    %435 = vector.shape_cast %434 : vector<1x4x100xf32> to vector<4x100xf32>
    %436 = vector.broadcast %433 : f32 to vector<4x100xf32>
    %437 = arith.mulf %436, %435 : vector<4x100xf32>
    %438 = arith.addf %429, %437 : vector<4x100xf32>
    %c44_i32_84 = arith.constant 44 : i32
    %439 = arith.addi %0, %c44_i32_84 : i32
    %c3_i32_85 = arith.constant 3 : i32
    %440 = arith.addi %439, %c3_i32_85 : i32
    %441 = arith.index_cast %440 : i32 to index
    %442 = memref.load %arg2[%441] : memref<432xf32, #tpu.memory_space<smem>>
    %443 = vector.extract_strided_slice %411 {offsets = [3, 0, 0], sizes = [1, 4, 100], strides = [1, 1, 1]} : vector<4x4x100xf32> to vector<1x4x100xf32>
    %444 = vector.shape_cast %443 : vector<1x4x100xf32> to vector<4x100xf32>
    %445 = vector.broadcast %442 : f32 to vector<4x100xf32>
    %446 = arith.mulf %445, %444 : vector<4x100xf32>
    %447 = arith.addf %438, %446 : vector<4x100xf32>
    %c90_i32_86 = arith.constant 90 : i32
    %448 = tpu.dynamic_rotate %337 by %c90_i32_86 dim 2 : vector<4x4x100xf32>, i32 -> vector<4x4x100xf32>
    %c48_i32 = arith.constant 48 : i32
    %449 = arith.addi %0, %c48_i32 : i32
    %c0_i32_87 = arith.constant 0 : i32
    %450 = arith.addi %449, %c0_i32_87 : i32
    %451 = arith.index_cast %450 : i32 to index
    %452 = memref.load %arg2[%451] : memref<432xf32, #tpu.memory_space<smem>>
    %453 = vector.extract_strided_slice %448 {offsets = [0, 0, 0], sizes = [1, 4, 100], strides = [1, 1, 1]} : vector<4x4x100xf32> to vector<1x4x100xf32>
    %454 = vector.shape_cast %453 : vector<1x4x100xf32> to vector<4x100xf32>
    %455 = vector.broadcast %452 : f32 to vector<4x100xf32>
    %456 = arith.mulf %455, %454 : vector<4x100xf32>
    %457 = arith.addf %447, %456 : vector<4x100xf32>
    %c48_i32_88 = arith.constant 48 : i32
    %458 = arith.addi %0, %c48_i32_88 : i32
    %c1_i32_89 = arith.constant 1 : i32
    %459 = arith.addi %458, %c1_i32_89 : i32
    %460 = arith.index_cast %459 : i32 to index
    %461 = memref.load %arg2[%460] : memref<432xf32, #tpu.memory_space<smem>>
    %462 = vector.extract_strided_slice %448 {offsets = [1, 0, 0], sizes = [1, 4, 100], strides = [1, 1, 1]} : vector<4x4x100xf32> to vector<1x4x100xf32>
    %463 = vector.shape_cast %462 : vector<1x4x100xf32> to vector<4x100xf32>
    %464 = vector.broadcast %461 : f32 to vector<4x100xf32>
    %465 = arith.mulf %464, %463 : vector<4x100xf32>
    %466 = arith.addf %457, %465 : vector<4x100xf32>
    %c48_i32_90 = arith.constant 48 : i32
    %467 = arith.addi %0, %c48_i32_90 : i32
    %c2_i32_91 = arith.constant 2 : i32
    %468 = arith.addi %467, %c2_i32_91 : i32
    %469 = arith.index_cast %468 : i32 to index
    %470 = memref.load %arg2[%469] : memref<432xf32, #tpu.memory_space<smem>>
    %471 = vector.extract_strided_slice %448 {offsets = [2, 0, 0], sizes = [1, 4, 100], strides = [1, 1, 1]} : vector<4x4x100xf32> to vector<1x4x100xf32>
    %472 = vector.shape_cast %471 : vector<1x4x100xf32> to vector<4x100xf32>
    %473 = vector.broadcast %470 : f32 to vector<4x100xf32>
    %474 = arith.mulf %473, %472 : vector<4x100xf32>
    %475 = arith.addf %466, %474 : vector<4x100xf32>
    %c48_i32_92 = arith.constant 48 : i32
    %476 = arith.addi %0, %c48_i32_92 : i32
    %c3_i32_93 = arith.constant 3 : i32
    %477 = arith.addi %476, %c3_i32_93 : i32
    %478 = arith.index_cast %477 : i32 to index
    %479 = memref.load %arg2[%478] : memref<432xf32, #tpu.memory_space<smem>>
    %480 = vector.extract_strided_slice %448 {offsets = [3, 0, 0], sizes = [1, 4, 100], strides = [1, 1, 1]} : vector<4x4x100xf32> to vector<1x4x100xf32>
    %481 = vector.shape_cast %480 : vector<1x4x100xf32> to vector<4x100xf32>
    %482 = vector.broadcast %479 : f32 to vector<4x100xf32>
    %483 = arith.mulf %482, %481 : vector<4x100xf32>
    %484 = arith.addf %475, %483 : vector<4x100xf32>
    %c89_i32_94 = arith.constant 89 : i32
    %485 = tpu.dynamic_rotate %337 by %c89_i32_94 dim 2 : vector<4x4x100xf32>, i32 -> vector<4x4x100xf32>
    %c52_i32 = arith.constant 52 : i32
    %486 = arith.addi %0, %c52_i32 : i32
    %c0_i32_95 = arith.constant 0 : i32
    %487 = arith.addi %486, %c0_i32_95 : i32
    %488 = arith.index_cast %487 : i32 to index
    %489 = memref.load %arg2[%488] : memref<432xf32, #tpu.memory_space<smem>>
    %490 = vector.extract_strided_slice %485 {offsets = [0, 0, 0], sizes = [1, 4, 100], strides = [1, 1, 1]} : vector<4x4x100xf32> to vector<1x4x100xf32>
    %491 = vector.shape_cast %490 : vector<1x4x100xf32> to vector<4x100xf32>
    %492 = vector.broadcast %489 : f32 to vector<4x100xf32>
    %493 = arith.mulf %492, %491 : vector<4x100xf32>
    %494 = arith.addf %484, %493 : vector<4x100xf32>
    %c52_i32_96 = arith.constant 52 : i32
    %495 = arith.addi %0, %c52_i32_96 : i32
    %c1_i32_97 = arith.constant 1 : i32
    %496 = arith.addi %495, %c1_i32_97 : i32
    %497 = arith.index_cast %496 : i32 to index
    %498 = memref.load %arg2[%497] : memref<432xf32, #tpu.memory_space<smem>>
    %499 = vector.extract_strided_slice %485 {offsets = [1, 0, 0], sizes = [1, 4, 100], strides = [1, 1, 1]} : vector<4x4x100xf32> to vector<1x4x100xf32>
    %500 = vector.shape_cast %499 : vector<1x4x100xf32> to vector<4x100xf32>
    %501 = vector.broadcast %498 : f32 to vector<4x100xf32>
    %502 = arith.mulf %501, %500 : vector<4x100xf32>
    %503 = arith.addf %494, %502 : vector<4x100xf32>
    %c52_i32_98 = arith.constant 52 : i32
    %504 = arith.addi %0, %c52_i32_98 : i32
    %c2_i32_99 = arith.constant 2 : i32
    %505 = arith.addi %504, %c2_i32_99 : i32
    %506 = arith.index_cast %505 : i32 to index
    %507 = memref.load %arg2[%506] : memref<432xf32, #tpu.memory_space<smem>>
    %508 = vector.extract_strided_slice %485 {offsets = [2, 0, 0], sizes = [1, 4, 100], strides = [1, 1, 1]} : vector<4x4x100xf32> to vector<1x4x100xf32>
    %509 = vector.shape_cast %508 : vector<1x4x100xf32> to vector<4x100xf32>
    %510 = vector.broadcast %507 : f32 to vector<4x100xf32>
    %511 = arith.mulf %510, %509 : vector<4x100xf32>
    %512 = arith.addf %503, %511 : vector<4x100xf32>
    %c52_i32_100 = arith.constant 52 : i32
    %513 = arith.addi %0, %c52_i32_100 : i32
    %c3_i32_101 = arith.constant 3 : i32
    %514 = arith.addi %513, %c3_i32_101 : i32
    %515 = arith.index_cast %514 : i32 to index
    %516 = memref.load %arg2[%515] : memref<432xf32, #tpu.memory_space<smem>>
    %517 = vector.extract_strided_slice %485 {offsets = [3, 0, 0], sizes = [1, 4, 100], strides = [1, 1, 1]} : vector<4x4x100xf32> to vector<1x4x100xf32>
    %518 = vector.shape_cast %517 : vector<1x4x100xf32> to vector<4x100xf32>
    %519 = vector.broadcast %516 : f32 to vector<4x100xf32>
    %520 = arith.mulf %519, %518 : vector<4x100xf32>
    %521 = arith.addf %512, %520 : vector<4x100xf32>
    %c88_i32_102 = arith.constant 88 : i32
    %522 = tpu.dynamic_rotate %337 by %c88_i32_102 dim 2 : vector<4x4x100xf32>, i32 -> vector<4x4x100xf32>
    %c56_i32 = arith.constant 56 : i32
    %523 = arith.addi %0, %c56_i32 : i32
    %c0_i32_103 = arith.constant 0 : i32
    %524 = arith.addi %523, %c0_i32_103 : i32
    %525 = arith.index_cast %524 : i32 to index
    %526 = memref.load %arg2[%525] : memref<432xf32, #tpu.memory_space<smem>>
    %527 = vector.extract_strided_slice %522 {offsets = [0, 0, 0], sizes = [1, 4, 100], strides = [1, 1, 1]} : vector<4x4x100xf32> to vector<1x4x100xf32>
    %528 = vector.shape_cast %527 : vector<1x4x100xf32> to vector<4x100xf32>
    %529 = vector.broadcast %526 : f32 to vector<4x100xf32>
    %530 = arith.mulf %529, %528 : vector<4x100xf32>
    %531 = arith.addf %521, %530 : vector<4x100xf32>
    %c56_i32_104 = arith.constant 56 : i32
    %532 = arith.addi %0, %c56_i32_104 : i32
    %c1_i32_105 = arith.constant 1 : i32
    %533 = arith.addi %532, %c1_i32_105 : i32
    %534 = arith.index_cast %533 : i32 to index
    %535 = memref.load %arg2[%534] : memref<432xf32, #tpu.memory_space<smem>>
    %536 = vector.extract_strided_slice %522 {offsets = [1, 0, 0], sizes = [1, 4, 100], strides = [1, 1, 1]} : vector<4x4x100xf32> to vector<1x4x100xf32>
    %537 = vector.shape_cast %536 : vector<1x4x100xf32> to vector<4x100xf32>
    %538 = vector.broadcast %535 : f32 to vector<4x100xf32>
    %539 = arith.mulf %538, %537 : vector<4x100xf32>
    %540 = arith.addf %531, %539 : vector<4x100xf32>
    %c56_i32_106 = arith.constant 56 : i32
    %541 = arith.addi %0, %c56_i32_106 : i32
    %c2_i32_107 = arith.constant 2 : i32
    %542 = arith.addi %541, %c2_i32_107 : i32
    %543 = arith.index_cast %542 : i32 to index
    %544 = memref.load %arg2[%543] : memref<432xf32, #tpu.memory_space<smem>>
    %545 = vector.extract_strided_slice %522 {offsets = [2, 0, 0], sizes = [1, 4, 100], strides = [1, 1, 1]} : vector<4x4x100xf32> to vector<1x4x100xf32>
    %546 = vector.shape_cast %545 : vector<1x4x100xf32> to vector<4x100xf32>
    %547 = vector.broadcast %544 : f32 to vector<4x100xf32>
    %548 = arith.mulf %547, %546 : vector<4x100xf32>
    %549 = arith.addf %540, %548 : vector<4x100xf32>
    %c56_i32_108 = arith.constant 56 : i32
    %550 = arith.addi %0, %c56_i32_108 : i32
    %c3_i32_109 = arith.constant 3 : i32
    %551 = arith.addi %550, %c3_i32_109 : i32
    %552 = arith.index_cast %551 : i32 to index
    %553 = memref.load %arg2[%552] : memref<432xf32, #tpu.memory_space<smem>>
    %554 = vector.extract_strided_slice %522 {offsets = [3, 0, 0], sizes = [1, 4, 100], strides = [1, 1, 1]} : vector<4x4x100xf32> to vector<1x4x100xf32>
    %555 = vector.shape_cast %554 : vector<1x4x100xf32> to vector<4x100xf32>
    %556 = vector.broadcast %553 : f32 to vector<4x100xf32>
    %557 = arith.mulf %556, %555 : vector<4x100xf32>
    %558 = arith.addf %549, %557 : vector<4x100xf32>
    %c80_i32_110 = arith.constant 80 : i32
    %559 = tpu.dynamic_rotate %337 by %c80_i32_110 dim 2 : vector<4x4x100xf32>, i32 -> vector<4x4x100xf32>
    %c60_i32 = arith.constant 60 : i32
    %560 = arith.addi %0, %c60_i32 : i32
    %c0_i32_111 = arith.constant 0 : i32
    %561 = arith.addi %560, %c0_i32_111 : i32
    %562 = arith.index_cast %561 : i32 to index
    %563 = memref.load %arg2[%562] : memref<432xf32, #tpu.memory_space<smem>>
    %564 = vector.extract_strided_slice %559 {offsets = [0, 0, 0], sizes = [1, 4, 100], strides = [1, 1, 1]} : vector<4x4x100xf32> to vector<1x4x100xf32>
    %565 = vector.shape_cast %564 : vector<1x4x100xf32> to vector<4x100xf32>
    %566 = vector.broadcast %563 : f32 to vector<4x100xf32>
    %567 = arith.mulf %566, %565 : vector<4x100xf32>
    %568 = arith.addf %558, %567 : vector<4x100xf32>
    %c60_i32_112 = arith.constant 60 : i32
    %569 = arith.addi %0, %c60_i32_112 : i32
    %c1_i32_113 = arith.constant 1 : i32
    %570 = arith.addi %569, %c1_i32_113 : i32
    %571 = arith.index_cast %570 : i32 to index
    %572 = memref.load %arg2[%571] : memref<432xf32, #tpu.memory_space<smem>>
    %573 = vector.extract_strided_slice %559 {offsets = [1, 0, 0], sizes = [1, 4, 100], strides = [1, 1, 1]} : vector<4x4x100xf32> to vector<1x4x100xf32>
    %574 = vector.shape_cast %573 : vector<1x4x100xf32> to vector<4x100xf32>
    %575 = vector.broadcast %572 : f32 to vector<4x100xf32>
    %576 = arith.mulf %575, %574 : vector<4x100xf32>
    %577 = arith.addf %568, %576 : vector<4x100xf32>
    %c60_i32_114 = arith.constant 60 : i32
    %578 = arith.addi %0, %c60_i32_114 : i32
    %c2_i32_115 = arith.constant 2 : i32
    %579 = arith.addi %578, %c2_i32_115 : i32
    %580 = arith.index_cast %579 : i32 to index
    %581 = memref.load %arg2[%580] : memref<432xf32, #tpu.memory_space<smem>>
    %582 = vector.extract_strided_slice %559 {offsets = [2, 0, 0], sizes = [1, 4, 100], strides = [1, 1, 1]} : vector<4x4x100xf32> to vector<1x4x100xf32>
    %583 = vector.shape_cast %582 : vector<1x4x100xf32> to vector<4x100xf32>
    %584 = vector.broadcast %581 : f32 to vector<4x100xf32>
    %585 = arith.mulf %584, %583 : vector<4x100xf32>
    %586 = arith.addf %577, %585 : vector<4x100xf32>
    %c60_i32_116 = arith.constant 60 : i32
    %587 = arith.addi %0, %c60_i32_116 : i32
    %c3_i32_117 = arith.constant 3 : i32
    %588 = arith.addi %587, %c3_i32_117 : i32
    %589 = arith.index_cast %588 : i32 to index
    %590 = memref.load %arg2[%589] : memref<432xf32, #tpu.memory_space<smem>>
    %591 = vector.extract_strided_slice %559 {offsets = [3, 0, 0], sizes = [1, 4, 100], strides = [1, 1, 1]} : vector<4x4x100xf32> to vector<1x4x100xf32>
    %592 = vector.shape_cast %591 : vector<1x4x100xf32> to vector<4x100xf32>
    %593 = vector.broadcast %590 : f32 to vector<4x100xf32>
    %594 = arith.mulf %593, %592 : vector<4x100xf32>
    %595 = arith.addf %586, %594 : vector<4x100xf32>
    %c79_i32_118 = arith.constant 79 : i32
    %596 = tpu.dynamic_rotate %337 by %c79_i32_118 dim 2 : vector<4x4x100xf32>, i32 -> vector<4x4x100xf32>
    %c64_i32 = arith.constant 64 : i32
    %597 = arith.addi %0, %c64_i32 : i32
    %c0_i32_119 = arith.constant 0 : i32
    %598 = arith.addi %597, %c0_i32_119 : i32
    %599 = arith.index_cast %598 : i32 to index
    %600 = memref.load %arg2[%599] : memref<432xf32, #tpu.memory_space<smem>>
    %601 = vector.extract_strided_slice %596 {offsets = [0, 0, 0], sizes = [1, 4, 100], strides = [1, 1, 1]} : vector<4x4x100xf32> to vector<1x4x100xf32>
    %602 = vector.shape_cast %601 : vector<1x4x100xf32> to vector<4x100xf32>
    %603 = vector.broadcast %600 : f32 to vector<4x100xf32>
    %604 = arith.mulf %603, %602 : vector<4x100xf32>
    %605 = arith.addf %595, %604 : vector<4x100xf32>
    %c64_i32_120 = arith.constant 64 : i32
    %606 = arith.addi %0, %c64_i32_120 : i32
    %c1_i32_121 = arith.constant 1 : i32
    %607 = arith.addi %606, %c1_i32_121 : i32
    %608 = arith.index_cast %607 : i32 to index
    %609 = memref.load %arg2[%608] : memref<432xf32, #tpu.memory_space<smem>>
    %610 = vector.extract_strided_slice %596 {offsets = [1, 0, 0], sizes = [1, 4, 100], strides = [1, 1, 1]} : vector<4x4x100xf32> to vector<1x4x100xf32>
    %611 = vector.shape_cast %610 : vector<1x4x100xf32> to vector<4x100xf32>
    %612 = vector.broadcast %609 : f32 to vector<4x100xf32>
    %613 = arith.mulf %612, %611 : vector<4x100xf32>
    %614 = arith.addf %605, %613 : vector<4x100xf32>
    %c64_i32_122 = arith.constant 64 : i32
    %615 = arith.addi %0, %c64_i32_122 : i32
    %c2_i32_123 = arith.constant 2 : i32
    %616 = arith.addi %615, %c2_i32_123 : i32
    %617 = arith.index_cast %616 : i32 to index
    %618 = memref.load %arg2[%617] : memref<432xf32, #tpu.memory_space<smem>>
    %619 = vector.extract_strided_slice %596 {offsets = [2, 0, 0], sizes = [1, 4, 100], strides = [1, 1, 1]} : vector<4x4x100xf32> to vector<1x4x100xf32>
    %620 = vector.shape_cast %619 : vector<1x4x100xf32> to vector<4x100xf32>
    %621 = vector.broadcast %618 : f32 to vector<4x100xf32>
    %622 = arith.mulf %621, %620 : vector<4x100xf32>
    %623 = arith.addf %614, %622 : vector<4x100xf32>
    %c64_i32_124 = arith.constant 64 : i32
    %624 = arith.addi %0, %c64_i32_124 : i32
    %c3_i32_125 = arith.constant 3 : i32
    %625 = arith.addi %624, %c3_i32_125 : i32
    %626 = arith.index_cast %625 : i32 to index
    %627 = memref.load %arg2[%626] : memref<432xf32, #tpu.memory_space<smem>>
    %628 = vector.extract_strided_slice %596 {offsets = [3, 0, 0], sizes = [1, 4, 100], strides = [1, 1, 1]} : vector<4x4x100xf32> to vector<1x4x100xf32>
    %629 = vector.shape_cast %628 : vector<1x4x100xf32> to vector<4x100xf32>
    %630 = vector.broadcast %627 : f32 to vector<4x100xf32>
    %631 = arith.mulf %630, %629 : vector<4x100xf32>
    %632 = arith.addf %623, %631 : vector<4x100xf32>
    %c78_i32_126 = arith.constant 78 : i32
    %633 = tpu.dynamic_rotate %337 by %c78_i32_126 dim 2 : vector<4x4x100xf32>, i32 -> vector<4x4x100xf32>
    %c68_i32 = arith.constant 68 : i32
    %634 = arith.addi %0, %c68_i32 : i32
    %c0_i32_127 = arith.constant 0 : i32
    %635 = arith.addi %634, %c0_i32_127 : i32
    %636 = arith.index_cast %635 : i32 to index
    %637 = memref.load %arg2[%636] : memref<432xf32, #tpu.memory_space<smem>>
    %638 = vector.extract_strided_slice %633 {offsets = [0, 0, 0], sizes = [1, 4, 100], strides = [1, 1, 1]} : vector<4x4x100xf32> to vector<1x4x100xf32>
    %639 = vector.shape_cast %638 : vector<1x4x100xf32> to vector<4x100xf32>
    %640 = vector.broadcast %637 : f32 to vector<4x100xf32>
    %641 = arith.mulf %640, %639 : vector<4x100xf32>
    %642 = arith.addf %632, %641 : vector<4x100xf32>
    %c68_i32_128 = arith.constant 68 : i32
    %643 = arith.addi %0, %c68_i32_128 : i32
    %c1_i32_129 = arith.constant 1 : i32
    %644 = arith.addi %643, %c1_i32_129 : i32
    %645 = arith.index_cast %644 : i32 to index
    %646 = memref.load %arg2[%645] : memref<432xf32, #tpu.memory_space<smem>>
    %647 = vector.extract_strided_slice %633 {offsets = [1, 0, 0], sizes = [1, 4, 100], strides = [1, 1, 1]} : vector<4x4x100xf32> to vector<1x4x100xf32>
    %648 = vector.shape_cast %647 : vector<1x4x100xf32> to vector<4x100xf32>
    %649 = vector.broadcast %646 : f32 to vector<4x100xf32>
    %650 = arith.mulf %649, %648 : vector<4x100xf32>
    %651 = arith.addf %642, %650 : vector<4x100xf32>
    %c68_i32_130 = arith.constant 68 : i32
    %652 = arith.addi %0, %c68_i32_130 : i32
    %c2_i32_131 = arith.constant 2 : i32
    %653 = arith.addi %652, %c2_i32_131 : i32
    %654 = arith.index_cast %653 : i32 to index
    %655 = memref.load %arg2[%654] : memref<432xf32, #tpu.memory_space<smem>>
    %656 = vector.extract_strided_slice %633 {offsets = [2, 0, 0], sizes = [1, 4, 100], strides = [1, 1, 1]} : vector<4x4x100xf32> to vector<1x4x100xf32>
    %657 = vector.shape_cast %656 : vector<1x4x100xf32> to vector<4x100xf32>
    %658 = vector.broadcast %655 : f32 to vector<4x100xf32>
    %659 = arith.mulf %658, %657 : vector<4x100xf32>
    %660 = arith.addf %651, %659 : vector<4x100xf32>
    %c68_i32_132 = arith.constant 68 : i32
    %661 = arith.addi %0, %c68_i32_132 : i32
    %c3_i32_133 = arith.constant 3 : i32
    %662 = arith.addi %661, %c3_i32_133 : i32
    %663 = arith.index_cast %662 : i32 to index
    %664 = memref.load %arg2[%663] : memref<432xf32, #tpu.memory_space<smem>>
    %665 = vector.extract_strided_slice %633 {offsets = [3, 0, 0], sizes = [1, 4, 100], strides = [1, 1, 1]} : vector<4x4x100xf32> to vector<1x4x100xf32>
    %666 = vector.shape_cast %665 : vector<1x4x100xf32> to vector<4x100xf32>
    %667 = vector.broadcast %664 : f32 to vector<4x100xf32>
    %668 = arith.mulf %667, %666 : vector<4x100xf32>
    %669 = arith.addf %660, %668 : vector<4x100xf32>
    %670 = vector.extract_strided_slice %2 {offsets = [0, 2, 0], sizes = [4, 4, 100], strides = [1, 1, 1]} : vector<4x6x100xf32> to vector<4x4x100xf32>
    %c72_i32 = arith.constant 72 : i32
    %671 = arith.addi %0, %c72_i32 : i32
    %c0_i32_134 = arith.constant 0 : i32
    %672 = arith.addi %671, %c0_i32_134 : i32
    %673 = arith.index_cast %672 : i32 to index
    %674 = memref.load %arg2[%673] : memref<432xf32, #tpu.memory_space<smem>>
    %675 = vector.extract_strided_slice %670 {offsets = [0, 0, 0], sizes = [1, 4, 100], strides = [1, 1, 1]} : vector<4x4x100xf32> to vector<1x4x100xf32>
    %676 = vector.shape_cast %675 : vector<1x4x100xf32> to vector<4x100xf32>
    %677 = vector.broadcast %674 : f32 to vector<4x100xf32>
    %678 = arith.mulf %677, %676 : vector<4x100xf32>
    %679 = arith.addf %669, %678 : vector<4x100xf32>
    %c72_i32_135 = arith.constant 72 : i32
    %680 = arith.addi %0, %c72_i32_135 : i32
    %c1_i32_136 = arith.constant 1 : i32
    %681 = arith.addi %680, %c1_i32_136 : i32
    %682 = arith.index_cast %681 : i32 to index
    %683 = memref.load %arg2[%682] : memref<432xf32, #tpu.memory_space<smem>>
    %684 = vector.extract_strided_slice %670 {offsets = [1, 0, 0], sizes = [1, 4, 100], strides = [1, 1, 1]} : vector<4x4x100xf32> to vector<1x4x100xf32>
    %685 = vector.shape_cast %684 : vector<1x4x100xf32> to vector<4x100xf32>
    %686 = vector.broadcast %683 : f32 to vector<4x100xf32>
    %687 = arith.mulf %686, %685 : vector<4x100xf32>
    %688 = arith.addf %679, %687 : vector<4x100xf32>
    %c72_i32_137 = arith.constant 72 : i32
    %689 = arith.addi %0, %c72_i32_137 : i32
    %c2_i32_138 = arith.constant 2 : i32
    %690 = arith.addi %689, %c2_i32_138 : i32
    %691 = arith.index_cast %690 : i32 to index
    %692 = memref.load %arg2[%691] : memref<432xf32, #tpu.memory_space<smem>>
    %693 = vector.extract_strided_slice %670 {offsets = [2, 0, 0], sizes = [1, 4, 100], strides = [1, 1, 1]} : vector<4x4x100xf32> to vector<1x4x100xf32>
    %694 = vector.shape_cast %693 : vector<1x4x100xf32> to vector<4x100xf32>
    %695 = vector.broadcast %692 : f32 to vector<4x100xf32>
    %696 = arith.mulf %695, %694 : vector<4x100xf32>
    %697 = arith.addf %688, %696 : vector<4x100xf32>
    %c72_i32_139 = arith.constant 72 : i32
    %698 = arith.addi %0, %c72_i32_139 : i32
    %c3_i32_140 = arith.constant 3 : i32
    %699 = arith.addi %698, %c3_i32_140 : i32
    %700 = arith.index_cast %699 : i32 to index
    %701 = memref.load %arg2[%700] : memref<432xf32, #tpu.memory_space<smem>>
    %702 = vector.extract_strided_slice %670 {offsets = [3, 0, 0], sizes = [1, 4, 100], strides = [1, 1, 1]} : vector<4x4x100xf32> to vector<1x4x100xf32>
    %703 = vector.shape_cast %702 : vector<1x4x100xf32> to vector<4x100xf32>
    %704 = vector.broadcast %701 : f32 to vector<4x100xf32>
    %705 = arith.mulf %704, %703 : vector<4x100xf32>
    %706 = arith.addf %697, %705 : vector<4x100xf32>
    %c99_i32_141 = arith.constant 99 : i32
    %707 = tpu.dynamic_rotate %670 by %c99_i32_141 dim 2 : vector<4x4x100xf32>, i32 -> vector<4x4x100xf32>
    %c76_i32 = arith.constant 76 : i32
    %708 = arith.addi %0, %c76_i32 : i32
    %c0_i32_142 = arith.constant 0 : i32
    %709 = arith.addi %708, %c0_i32_142 : i32
    %710 = arith.index_cast %709 : i32 to index
    %711 = memref.load %arg2[%710] : memref<432xf32, #tpu.memory_space<smem>>
    %712 = vector.extract_strided_slice %707 {offsets = [0, 0, 0], sizes = [1, 4, 100], strides = [1, 1, 1]} : vector<4x4x100xf32> to vector<1x4x100xf32>
    %713 = vector.shape_cast %712 : vector<1x4x100xf32> to vector<4x100xf32>
    %714 = vector.broadcast %711 : f32 to vector<4x100xf32>
    %715 = arith.mulf %714, %713 : vector<4x100xf32>
    %716 = arith.addf %706, %715 : vector<4x100xf32>
    %c76_i32_143 = arith.constant 76 : i32
    %717 = arith.addi %0, %c76_i32_143 : i32
    %c1_i32_144 = arith.constant 1 : i32
    %718 = arith.addi %717, %c1_i32_144 : i32
    %719 = arith.index_cast %718 : i32 to index
    %720 = memref.load %arg2[%719] : memref<432xf32, #tpu.memory_space<smem>>
    %721 = vector.extract_strided_slice %707 {offsets = [1, 0, 0], sizes = [1, 4, 100], strides = [1, 1, 1]} : vector<4x4x100xf32> to vector<1x4x100xf32>
    %722 = vector.shape_cast %721 : vector<1x4x100xf32> to vector<4x100xf32>
    %723 = vector.broadcast %720 : f32 to vector<4x100xf32>
    %724 = arith.mulf %723, %722 : vector<4x100xf32>
    %725 = arith.addf %716, %724 : vector<4x100xf32>
    %c76_i32_145 = arith.constant 76 : i32
    %726 = arith.addi %0, %c76_i32_145 : i32
    %c2_i32_146 = arith.constant 2 : i32
    %727 = arith.addi %726, %c2_i32_146 : i32
    %728 = arith.index_cast %727 : i32 to index
    %729 = memref.load %arg2[%728] : memref<432xf32, #tpu.memory_space<smem>>
    %730 = vector.extract_strided_slice %707 {offsets = [2, 0, 0], sizes = [1, 4, 100], strides = [1, 1, 1]} : vector<4x4x100xf32> to vector<1x4x100xf32>
    %731 = vector.shape_cast %730 : vector<1x4x100xf32> to vector<4x100xf32>
    %732 = vector.broadcast %729 : f32 to vector<4x100xf32>
    %733 = arith.mulf %732, %731 : vector<4x100xf32>
    %734 = arith.addf %725, %733 : vector<4x100xf32>
    %c76_i32_147 = arith.constant 76 : i32
    %735 = arith.addi %0, %c76_i32_147 : i32
    %c3_i32_148 = arith.constant 3 : i32
    %736 = arith.addi %735, %c3_i32_148 : i32
    %737 = arith.index_cast %736 : i32 to index
    %738 = memref.load %arg2[%737] : memref<432xf32, #tpu.memory_space<smem>>
    %739 = vector.extract_strided_slice %707 {offsets = [3, 0, 0], sizes = [1, 4, 100], strides = [1, 1, 1]} : vector<4x4x100xf32> to vector<1x4x100xf32>
    %740 = vector.shape_cast %739 : vector<1x4x100xf32> to vector<4x100xf32>
    %741 = vector.broadcast %738 : f32 to vector<4x100xf32>
    %742 = arith.mulf %741, %740 : vector<4x100xf32>
    %743 = arith.addf %734, %742 : vector<4x100xf32>
    %c98_i32_149 = arith.constant 98 : i32
    %744 = tpu.dynamic_rotate %670 by %c98_i32_149 dim 2 : vector<4x4x100xf32>, i32 -> vector<4x4x100xf32>
    %c80_i32_150 = arith.constant 80 : i32
    %745 = arith.addi %0, %c80_i32_150 : i32
    %c0_i32_151 = arith.constant 0 : i32
    %746 = arith.addi %745, %c0_i32_151 : i32
    %747 = arith.index_cast %746 : i32 to index
    %748 = memref.load %arg2[%747] : memref<432xf32, #tpu.memory_space<smem>>
    %749 = vector.extract_strided_slice %744 {offsets = [0, 0, 0], sizes = [1, 4, 100], strides = [1, 1, 1]} : vector<4x4x100xf32> to vector<1x4x100xf32>
    %750 = vector.shape_cast %749 : vector<1x4x100xf32> to vector<4x100xf32>
    %751 = vector.broadcast %748 : f32 to vector<4x100xf32>
    %752 = arith.mulf %751, %750 : vector<4x100xf32>
    %753 = arith.addf %743, %752 : vector<4x100xf32>
    %c80_i32_152 = arith.constant 80 : i32
    %754 = arith.addi %0, %c80_i32_152 : i32
    %c1_i32_153 = arith.constant 1 : i32
    %755 = arith.addi %754, %c1_i32_153 : i32
    %756 = arith.index_cast %755 : i32 to index
    %757 = memref.load %arg2[%756] : memref<432xf32, #tpu.memory_space<smem>>
    %758 = vector.extract_strided_slice %744 {offsets = [1, 0, 0], sizes = [1, 4, 100], strides = [1, 1, 1]} : vector<4x4x100xf32> to vector<1x4x100xf32>
    %759 = vector.shape_cast %758 : vector<1x4x100xf32> to vector<4x100xf32>
    %760 = vector.broadcast %757 : f32 to vector<4x100xf32>
    %761 = arith.mulf %760, %759 : vector<4x100xf32>
    %762 = arith.addf %753, %761 : vector<4x100xf32>
    %c80_i32_154 = arith.constant 80 : i32
    %763 = arith.addi %0, %c80_i32_154 : i32
    %c2_i32_155 = arith.constant 2 : i32
    %764 = arith.addi %763, %c2_i32_155 : i32
    %765 = arith.index_cast %764 : i32 to index
    %766 = memref.load %arg2[%765] : memref<432xf32, #tpu.memory_space<smem>>
    %767 = vector.extract_strided_slice %744 {offsets = [2, 0, 0], sizes = [1, 4, 100], strides = [1, 1, 1]} : vector<4x4x100xf32> to vector<1x4x100xf32>
    %768 = vector.shape_cast %767 : vector<1x4x100xf32> to vector<4x100xf32>
    %769 = vector.broadcast %766 : f32 to vector<4x100xf32>
    %770 = arith.mulf %769, %768 : vector<4x100xf32>
    %771 = arith.addf %762, %770 : vector<4x100xf32>
    %c80_i32_156 = arith.constant 80 : i32
    %772 = arith.addi %0, %c80_i32_156 : i32
    %c3_i32_157 = arith.constant 3 : i32
    %773 = arith.addi %772, %c3_i32_157 : i32
    %774 = arith.index_cast %773 : i32 to index
    %775 = memref.load %arg2[%774] : memref<432xf32, #tpu.memory_space<smem>>
    %776 = vector.extract_strided_slice %744 {offsets = [3, 0, 0], sizes = [1, 4, 100], strides = [1, 1, 1]} : vector<4x4x100xf32> to vector<1x4x100xf32>
    %777 = vector.shape_cast %776 : vector<1x4x100xf32> to vector<4x100xf32>
    %778 = vector.broadcast %775 : f32 to vector<4x100xf32>
    %779 = arith.mulf %778, %777 : vector<4x100xf32>
    %780 = arith.addf %771, %779 : vector<4x100xf32>
    %c90_i32_158 = arith.constant 90 : i32
    %781 = tpu.dynamic_rotate %670 by %c90_i32_158 dim 2 : vector<4x4x100xf32>, i32 -> vector<4x4x100xf32>
    %c84_i32 = arith.constant 84 : i32
    %782 = arith.addi %0, %c84_i32 : i32
    %c0_i32_159 = arith.constant 0 : i32
    %783 = arith.addi %782, %c0_i32_159 : i32
    %784 = arith.index_cast %783 : i32 to index
    %785 = memref.load %arg2[%784] : memref<432xf32, #tpu.memory_space<smem>>
    %786 = vector.extract_strided_slice %781 {offsets = [0, 0, 0], sizes = [1, 4, 100], strides = [1, 1, 1]} : vector<4x4x100xf32> to vector<1x4x100xf32>
    %787 = vector.shape_cast %786 : vector<1x4x100xf32> to vector<4x100xf32>
    %788 = vector.broadcast %785 : f32 to vector<4x100xf32>
    %789 = arith.mulf %788, %787 : vector<4x100xf32>
    %790 = arith.addf %780, %789 : vector<4x100xf32>
    %c84_i32_160 = arith.constant 84 : i32
    %791 = arith.addi %0, %c84_i32_160 : i32
    %c1_i32_161 = arith.constant 1 : i32
    %792 = arith.addi %791, %c1_i32_161 : i32
    %793 = arith.index_cast %792 : i32 to index
    %794 = memref.load %arg2[%793] : memref<432xf32, #tpu.memory_space<smem>>
    %795 = vector.extract_strided_slice %781 {offsets = [1, 0, 0], sizes = [1, 4, 100], strides = [1, 1, 1]} : vector<4x4x100xf32> to vector<1x4x100xf32>
    %796 = vector.shape_cast %795 : vector<1x4x100xf32> to vector<4x100xf32>
    %797 = vector.broadcast %794 : f32 to vector<4x100xf32>
    %798 = arith.mulf %797, %796 : vector<4x100xf32>
    %799 = arith.addf %790, %798 : vector<4x100xf32>
    %c84_i32_162 = arith.constant 84 : i32
    %800 = arith.addi %0, %c84_i32_162 : i32
    %c2_i32_163 = arith.constant 2 : i32
    %801 = arith.addi %800, %c2_i32_163 : i32
    %802 = arith.index_cast %801 : i32 to index
    %803 = memref.load %arg2[%802] : memref<432xf32, #tpu.memory_space<smem>>
    %804 = vector.extract_strided_slice %781 {offsets = [2, 0, 0], sizes = [1, 4, 100], strides = [1, 1, 1]} : vector<4x4x100xf32> to vector<1x4x100xf32>
    %805 = vector.shape_cast %804 : vector<1x4x100xf32> to vector<4x100xf32>
    %806 = vector.broadcast %803 : f32 to vector<4x100xf32>
    %807 = arith.mulf %806, %805 : vector<4x100xf32>
    %808 = arith.addf %799, %807 : vector<4x100xf32>
    %c84_i32_164 = arith.constant 84 : i32
    %809 = arith.addi %0, %c84_i32_164 : i32
    %c3_i32_165 = arith.constant 3 : i32
    %810 = arith.addi %809, %c3_i32_165 : i32
    %811 = arith.index_cast %810 : i32 to index
    %812 = memref.load %arg2[%811] : memref<432xf32, #tpu.memory_space<smem>>
    %813 = vector.extract_strided_slice %781 {offsets = [3, 0, 0], sizes = [1, 4, 100], strides = [1, 1, 1]} : vector<4x4x100xf32> to vector<1x4x100xf32>
    %814 = vector.shape_cast %813 : vector<1x4x100xf32> to vector<4x100xf32>
    %815 = vector.broadcast %812 : f32 to vector<4x100xf32>
    %816 = arith.mulf %815, %814 : vector<4x100xf32>
    %817 = arith.addf %808, %816 : vector<4x100xf32>
    %c89_i32_166 = arith.constant 89 : i32
    %818 = tpu.dynamic_rotate %670 by %c89_i32_166 dim 2 : vector<4x4x100xf32>, i32 -> vector<4x4x100xf32>
    %c88_i32_167 = arith.constant 88 : i32
    %819 = arith.addi %0, %c88_i32_167 : i32
    %c0_i32_168 = arith.constant 0 : i32
    %820 = arith.addi %819, %c0_i32_168 : i32
    %821 = arith.index_cast %820 : i32 to index
    %822 = memref.load %arg2[%821] : memref<432xf32, #tpu.memory_space<smem>>
    %823 = vector.extract_strided_slice %818 {offsets = [0, 0, 0], sizes = [1, 4, 100], strides = [1, 1, 1]} : vector<4x4x100xf32> to vector<1x4x100xf32>
    %824 = vector.shape_cast %823 : vector<1x4x100xf32> to vector<4x100xf32>
    %825 = vector.broadcast %822 : f32 to vector<4x100xf32>
    %826 = arith.mulf %825, %824 : vector<4x100xf32>
    %827 = arith.addf %817, %826 : vector<4x100xf32>
    %c88_i32_169 = arith.constant 88 : i32
    %828 = arith.addi %0, %c88_i32_169 : i32
    %c1_i32_170 = arith.constant 1 : i32
    %829 = arith.addi %828, %c1_i32_170 : i32
    %830 = arith.index_cast %829 : i32 to index
    %831 = memref.load %arg2[%830] : memref<432xf32, #tpu.memory_space<smem>>
    %832 = vector.extract_strided_slice %818 {offsets = [1, 0, 0], sizes = [1, 4, 100], strides = [1, 1, 1]} : vector<4x4x100xf32> to vector<1x4x100xf32>
    %833 = vector.shape_cast %832 : vector<1x4x100xf32> to vector<4x100xf32>
    %834 = vector.broadcast %831 : f32 to vector<4x100xf32>
    %835 = arith.mulf %834, %833 : vector<4x100xf32>
    %836 = arith.addf %827, %835 : vector<4x100xf32>
    %c88_i32_171 = arith.constant 88 : i32
    %837 = arith.addi %0, %c88_i32_171 : i32
    %c2_i32_172 = arith.constant 2 : i32
    %838 = arith.addi %837, %c2_i32_172 : i32
    %839 = arith.index_cast %838 : i32 to index
    %840 = memref.load %arg2[%839] : memref<432xf32, #tpu.memory_space<smem>>
    %841 = vector.extract_strided_slice %818 {offsets = [2, 0, 0], sizes = [1, 4, 100], strides = [1, 1, 1]} : vector<4x4x100xf32> to vector<1x4x100xf32>
    %842 = vector.shape_cast %841 : vector<1x4x100xf32> to vector<4x100xf32>
    %843 = vector.broadcast %840 : f32 to vector<4x100xf32>
    %844 = arith.mulf %843, %842 : vector<4x100xf32>
    %845 = arith.addf %836, %844 : vector<4x100xf32>
    %c88_i32_173 = arith.constant 88 : i32
    %846 = arith.addi %0, %c88_i32_173 : i32
    %c3_i32_174 = arith.constant 3 : i32
    %847 = arith.addi %846, %c3_i32_174 : i32
    %848 = arith.index_cast %847 : i32 to index
    %849 = memref.load %arg2[%848] : memref<432xf32, #tpu.memory_space<smem>>
    %850 = vector.extract_strided_slice %818 {offsets = [3, 0, 0], sizes = [1, 4, 100], strides = [1, 1, 1]} : vector<4x4x100xf32> to vector<1x4x100xf32>
    %851 = vector.shape_cast %850 : vector<1x4x100xf32> to vector<4x100xf32>
    %852 = vector.broadcast %849 : f32 to vector<4x100xf32>
    %853 = arith.mulf %852, %851 : vector<4x100xf32>
    %854 = arith.addf %845, %853 : vector<4x100xf32>
    %c88_i32_175 = arith.constant 88 : i32
    %855 = tpu.dynamic_rotate %670 by %c88_i32_175 dim 2 : vector<4x4x100xf32>, i32 -> vector<4x4x100xf32>
    %c92_i32 = arith.constant 92 : i32
    %856 = arith.addi %0, %c92_i32 : i32
    %c0_i32_176 = arith.constant 0 : i32
    %857 = arith.addi %856, %c0_i32_176 : i32
    %858 = arith.index_cast %857 : i32 to index
    %859 = memref.load %arg2[%858] : memref<432xf32, #tpu.memory_space<smem>>
    %860 = vector.extract_strided_slice %855 {offsets = [0, 0, 0], sizes = [1, 4, 100], strides = [1, 1, 1]} : vector<4x4x100xf32> to vector<1x4x100xf32>
    %861 = vector.shape_cast %860 : vector<1x4x100xf32> to vector<4x100xf32>
    %862 = vector.broadcast %859 : f32 to vector<4x100xf32>
    %863 = arith.mulf %862, %861 : vector<4x100xf32>
    %864 = arith.addf %854, %863 : vector<4x100xf32>
    %c92_i32_177 = arith.constant 92 : i32
    %865 = arith.addi %0, %c92_i32_177 : i32
    %c1_i32_178 = arith.constant 1 : i32
    %866 = arith.addi %865, %c1_i32_178 : i32
    %867 = arith.index_cast %866 : i32 to index
    %868 = memref.load %arg2[%867] : memref<432xf32, #tpu.memory_space<smem>>
    %869 = vector.extract_strided_slice %855 {offsets = [1, 0, 0], sizes = [1, 4, 100], strides = [1, 1, 1]} : vector<4x4x100xf32> to vector<1x4x100xf32>
    %870 = vector.shape_cast %869 : vector<1x4x100xf32> to vector<4x100xf32>
    %871 = vector.broadcast %868 : f32 to vector<4x100xf32>
    %872 = arith.mulf %871, %870 : vector<4x100xf32>
    %873 = arith.addf %864, %872 : vector<4x100xf32>
    %c92_i32_179 = arith.constant 92 : i32
    %874 = arith.addi %0, %c92_i32_179 : i32
    %c2_i32_180 = arith.constant 2 : i32
    %875 = arith.addi %874, %c2_i32_180 : i32
    %876 = arith.index_cast %875 : i32 to index
    %877 = memref.load %arg2[%876] : memref<432xf32, #tpu.memory_space<smem>>
    %878 = vector.extract_strided_slice %855 {offsets = [2, 0, 0], sizes = [1, 4, 100], strides = [1, 1, 1]} : vector<4x4x100xf32> to vector<1x4x100xf32>
    %879 = vector.shape_cast %878 : vector<1x4x100xf32> to vector<4x100xf32>
    %880 = vector.broadcast %877 : f32 to vector<4x100xf32>
    %881 = arith.mulf %880, %879 : vector<4x100xf32>
    %882 = arith.addf %873, %881 : vector<4x100xf32>
    %c92_i32_181 = arith.constant 92 : i32
    %883 = arith.addi %0, %c92_i32_181 : i32
    %c3_i32_182 = arith.constant 3 : i32
    %884 = arith.addi %883, %c3_i32_182 : i32
    %885 = arith.index_cast %884 : i32 to index
    %886 = memref.load %arg2[%885] : memref<432xf32, #tpu.memory_space<smem>>
    %887 = vector.extract_strided_slice %855 {offsets = [3, 0, 0], sizes = [1, 4, 100], strides = [1, 1, 1]} : vector<4x4x100xf32> to vector<1x4x100xf32>
    %888 = vector.shape_cast %887 : vector<1x4x100xf32> to vector<4x100xf32>
    %889 = vector.broadcast %886 : f32 to vector<4x100xf32>
    %890 = arith.mulf %889, %888 : vector<4x100xf32>
    %891 = arith.addf %882, %890 : vector<4x100xf32>
    %c80_i32_183 = arith.constant 80 : i32
    %892 = tpu.dynamic_rotate %670 by %c80_i32_183 dim 2 : vector<4x4x100xf32>, i32 -> vector<4x4x100xf32>
    %c96_i32 = arith.constant 96 : i32
    %893 = arith.addi %0, %c96_i32 : i32
    %c0_i32_184 = arith.constant 0 : i32
    %894 = arith.addi %893, %c0_i32_184 : i32
    %895 = arith.index_cast %894 : i32 to index
    %896 = memref.load %arg2[%895] : memref<432xf32, #tpu.memory_space<smem>>
    %897 = vector.extract_strided_slice %892 {offsets = [0, 0, 0], sizes = [1, 4, 100], strides = [1, 1, 1]} : vector<4x4x100xf32> to vector<1x4x100xf32>
    %898 = vector.shape_cast %897 : vector<1x4x100xf32> to vector<4x100xf32>
    %899 = vector.broadcast %896 : f32 to vector<4x100xf32>
    %900 = arith.mulf %899, %898 : vector<4x100xf32>
    %901 = arith.addf %891, %900 : vector<4x100xf32>
    %c96_i32_185 = arith.constant 96 : i32
    %902 = arith.addi %0, %c96_i32_185 : i32
    %c1_i32_186 = arith.constant 1 : i32
    %903 = arith.addi %902, %c1_i32_186 : i32
    %904 = arith.index_cast %903 : i32 to index
    %905 = memref.load %arg2[%904] : memref<432xf32, #tpu.memory_space<smem>>
    %906 = vector.extract_strided_slice %892 {offsets = [1, 0, 0], sizes = [1, 4, 100], strides = [1, 1, 1]} : vector<4x4x100xf32> to vector<1x4x100xf32>
    %907 = vector.shape_cast %906 : vector<1x4x100xf32> to vector<4x100xf32>
    %908 = vector.broadcast %905 : f32 to vector<4x100xf32>
    %909 = arith.mulf %908, %907 : vector<4x100xf32>
    %910 = arith.addf %901, %909 : vector<4x100xf32>
    %c96_i32_187 = arith.constant 96 : i32
    %911 = arith.addi %0, %c96_i32_187 : i32
    %c2_i32_188 = arith.constant 2 : i32
    %912 = arith.addi %911, %c2_i32_188 : i32
    %913 = arith.index_cast %912 : i32 to index
    %914 = memref.load %arg2[%913] : memref<432xf32, #tpu.memory_space<smem>>
    %915 = vector.extract_strided_slice %892 {offsets = [2, 0, 0], sizes = [1, 4, 100], strides = [1, 1, 1]} : vector<4x4x100xf32> to vector<1x4x100xf32>
    %916 = vector.shape_cast %915 : vector<1x4x100xf32> to vector<4x100xf32>
    %917 = vector.broadcast %914 : f32 to vector<4x100xf32>
    %918 = arith.mulf %917, %916 : vector<4x100xf32>
    %919 = arith.addf %910, %918 : vector<4x100xf32>
    %c96_i32_189 = arith.constant 96 : i32
    %920 = arith.addi %0, %c96_i32_189 : i32
    %c3_i32_190 = arith.constant 3 : i32
    %921 = arith.addi %920, %c3_i32_190 : i32
    %922 = arith.index_cast %921 : i32 to index
    %923 = memref.load %arg2[%922] : memref<432xf32, #tpu.memory_space<smem>>
    %924 = vector.extract_strided_slice %892 {offsets = [3, 0, 0], sizes = [1, 4, 100], strides = [1, 1, 1]} : vector<4x4x100xf32> to vector<1x4x100xf32>
    %925 = vector.shape_cast %924 : vector<1x4x100xf32> to vector<4x100xf32>
    %926 = vector.broadcast %923 : f32 to vector<4x100xf32>
    %927 = arith.mulf %926, %925 : vector<4x100xf32>
    %928 = arith.addf %919, %927 : vector<4x100xf32>
    %c79_i32_191 = arith.constant 79 : i32
    %929 = tpu.dynamic_rotate %670 by %c79_i32_191 dim 2 : vector<4x4x100xf32>, i32 -> vector<4x4x100xf32>
    %c100_i32 = arith.constant 100 : i32
    %930 = arith.addi %0, %c100_i32 : i32
    %c0_i32_192 = arith.constant 0 : i32
    %931 = arith.addi %930, %c0_i32_192 : i32
    %932 = arith.index_cast %931 : i32 to index
    %933 = memref.load %arg2[%932] : memref<432xf32, #tpu.memory_space<smem>>
    %934 = vector.extract_strided_slice %929 {offsets = [0, 0, 0], sizes = [1, 4, 100], strides = [1, 1, 1]} : vector<4x4x100xf32> to vector<1x4x100xf32>
    %935 = vector.shape_cast %934 : vector<1x4x100xf32> to vector<4x100xf32>
    %936 = vector.broadcast %933 : f32 to vector<4x100xf32>
    %937 = arith.mulf %936, %935 : vector<4x100xf32>
    %938 = arith.addf %928, %937 : vector<4x100xf32>
    %c100_i32_193 = arith.constant 100 : i32
    %939 = arith.addi %0, %c100_i32_193 : i32
    %c1_i32_194 = arith.constant 1 : i32
    %940 = arith.addi %939, %c1_i32_194 : i32
    %941 = arith.index_cast %940 : i32 to index
    %942 = memref.load %arg2[%941] : memref<432xf32, #tpu.memory_space<smem>>
    %943 = vector.extract_strided_slice %929 {offsets = [1, 0, 0], sizes = [1, 4, 100], strides = [1, 1, 1]} : vector<4x4x100xf32> to vector<1x4x100xf32>
    %944 = vector.shape_cast %943 : vector<1x4x100xf32> to vector<4x100xf32>
    %945 = vector.broadcast %942 : f32 to vector<4x100xf32>
    %946 = arith.mulf %945, %944 : vector<4x100xf32>
    %947 = arith.addf %938, %946 : vector<4x100xf32>
    %c100_i32_195 = arith.constant 100 : i32
    %948 = arith.addi %0, %c100_i32_195 : i32
    %c2_i32_196 = arith.constant 2 : i32
    %949 = arith.addi %948, %c2_i32_196 : i32
    %950 = arith.index_cast %949 : i32 to index
    %951 = memref.load %arg2[%950] : memref<432xf32, #tpu.memory_space<smem>>
    %952 = vector.extract_strided_slice %929 {offsets = [2, 0, 0], sizes = [1, 4, 100], strides = [1, 1, 1]} : vector<4x4x100xf32> to vector<1x4x100xf32>
    %953 = vector.shape_cast %952 : vector<1x4x100xf32> to vector<4x100xf32>
    %954 = vector.broadcast %951 : f32 to vector<4x100xf32>
    %955 = arith.mulf %954, %953 : vector<4x100xf32>
    %956 = arith.addf %947, %955 : vector<4x100xf32>
    %c100_i32_197 = arith.constant 100 : i32
    %957 = arith.addi %0, %c100_i32_197 : i32
    %c3_i32_198 = arith.constant 3 : i32
    %958 = arith.addi %957, %c3_i32_198 : i32
    %959 = arith.index_cast %958 : i32 to index
    %960 = memref.load %arg2[%959] : memref<432xf32, #tpu.memory_space<smem>>
    %961 = vector.extract_strided_slice %929 {offsets = [3, 0, 0], sizes = [1, 4, 100], strides = [1, 1, 1]} : vector<4x4x100xf32> to vector<1x4x100xf32>
    %962 = vector.shape_cast %961 : vector<1x4x100xf32> to vector<4x100xf32>
    %963 = vector.broadcast %960 : f32 to vector<4x100xf32>
    %964 = arith.mulf %963, %962 : vector<4x100xf32>
    %965 = arith.addf %956, %964 : vector<4x100xf32>
    %c78_i32_199 = arith.constant 78 : i32
    %966 = tpu.dynamic_rotate %670 by %c78_i32_199 dim 2 : vector<4x4x100xf32>, i32 -> vector<4x4x100xf32>
    %c104_i32 = arith.constant 104 : i32
    %967 = arith.addi %0, %c104_i32 : i32
    %c0_i32_200 = arith.constant 0 : i32
    %968 = arith.addi %967, %c0_i32_200 : i32
    %969 = arith.index_cast %968 : i32 to index
    %970 = memref.load %arg2[%969] : memref<432xf32, #tpu.memory_space<smem>>
    %971 = vector.extract_strided_slice %966 {offsets = [0, 0, 0], sizes = [1, 4, 100], strides = [1, 1, 1]} : vector<4x4x100xf32> to vector<1x4x100xf32>
    %972 = vector.shape_cast %971 : vector<1x4x100xf32> to vector<4x100xf32>
    %973 = vector.broadcast %970 : f32 to vector<4x100xf32>
    %974 = arith.mulf %973, %972 : vector<4x100xf32>
    %975 = arith.addf %965, %974 : vector<4x100xf32>
    %c104_i32_201 = arith.constant 104 : i32
    %976 = arith.addi %0, %c104_i32_201 : i32
    %c1_i32_202 = arith.constant 1 : i32
    %977 = arith.addi %976, %c1_i32_202 : i32
    %978 = arith.index_cast %977 : i32 to index
    %979 = memref.load %arg2[%978] : memref<432xf32, #tpu.memory_space<smem>>
    %980 = vector.extract_strided_slice %966 {offsets = [1, 0, 0], sizes = [1, 4, 100], strides = [1, 1, 1]} : vector<4x4x100xf32> to vector<1x4x100xf32>
    %981 = vector.shape_cast %980 : vector<1x4x100xf32> to vector<4x100xf32>
    %982 = vector.broadcast %979 : f32 to vector<4x100xf32>
    %983 = arith.mulf %982, %981 : vector<4x100xf32>
    %984 = arith.addf %975, %983 : vector<4x100xf32>
    %c104_i32_203 = arith.constant 104 : i32
    %985 = arith.addi %0, %c104_i32_203 : i32
    %c2_i32_204 = arith.constant 2 : i32
    %986 = arith.addi %985, %c2_i32_204 : i32
    %987 = arith.index_cast %986 : i32 to index
    %988 = memref.load %arg2[%987] : memref<432xf32, #tpu.memory_space<smem>>
    %989 = vector.extract_strided_slice %966 {offsets = [2, 0, 0], sizes = [1, 4, 100], strides = [1, 1, 1]} : vector<4x4x100xf32> to vector<1x4x100xf32>
    %990 = vector.shape_cast %989 : vector<1x4x100xf32> to vector<4x100xf32>
    %991 = vector.broadcast %988 : f32 to vector<4x100xf32>
    %992 = arith.mulf %991, %990 : vector<4x100xf32>
    %993 = arith.addf %984, %992 : vector<4x100xf32>
    %c104_i32_205 = arith.constant 104 : i32
    %994 = arith.addi %0, %c104_i32_205 : i32
    %c3_i32_206 = arith.constant 3 : i32
    %995 = arith.addi %994, %c3_i32_206 : i32
    %996 = arith.index_cast %995 : i32 to index
    %997 = memref.load %arg2[%996] : memref<432xf32, #tpu.memory_space<smem>>
    %998 = vector.extract_strided_slice %966 {offsets = [3, 0, 0], sizes = [1, 4, 100], strides = [1, 1, 1]} : vector<4x4x100xf32> to vector<1x4x100xf32>
    %999 = vector.shape_cast %998 : vector<1x4x100xf32> to vector<4x100xf32>
    %1000 = vector.broadcast %997 : f32 to vector<4x100xf32>
    %1001 = arith.mulf %1000, %999 : vector<4x100xf32>
    %1002 = arith.addf %993, %1001 : vector<4x100xf32>
    %1003 = arith.index_cast %arg1 : i32 to index
    %1004 = memref.load %arg3[%1003] : memref<4xf32, #tpu.memory_space<smem>>
    %1005 = vector.broadcast %1004 : f32 to vector<4x100xf32>
    %1006 = arith.addf %1002, %1005 : vector<4x100xf32>
    %c0_207 = arith.constant 0 : index
    %c0_208 = arith.constant 0 : index
    %c0_209 = arith.constant 0 : index
    %c0_210 = arith.constant 0 : index
    %1007 = vector.load %arg5[%c0_207, %c0_208, %c0_209, %c0_210] : memref<1x1x4x100xf32, #tpu.memory_space<vmem>>, vector<1x1x4x100xf32>
    %1008 = vector.shape_cast %1007 : vector<1x1x4x100xf32> to vector<4x100xf32>
    %1009 = vector.shape_cast %1006 : vector<4x100xf32> to vector<1x1x4x100xf32>
    tpu.vector_store %arg5[%c0_207, %c0_208, %c0_209, %c0_210], %1009 {strides = array<i32>} : memref<1x1x4x100xf32, #tpu.memory_space<vmem>>, vector<1x1x4x100xf32>,
    return
  }
  func.func @transform_0(%arg0: i32, %arg1: i32, %arg2: memref<432xf32, #tpu.memory_space<smem>>, %arg3: memref<4xf32, #tpu.memory_space<smem>>) -> (i32, i32, i32, i32) {
    %c0_i32 = arith.constant 0 : i32
    %c0_i32_0 = arith.constant 0 : i32
    %c0_i32_1 = arith.constant 0 : i32
    %c0_i32_2 = arith.constant 0 : i32
    return %arg0, %c0_i32, %c0_i32_0, %c0_i32_1 : i32, i32, i32, i32
  }
  func.func @transform_1(%arg0: i32, %arg1: i32, %arg2: memref<432xf32, #tpu.memory_space<smem>>, %arg3: memref<4xf32, #tpu.memory_space<smem>>) -> (i32, i32, i32, i32) {
    %c0_i32 = arith.constant 0 : i32
    %c0_i32_0 = arith.constant 0 : i32
    %c0_i32_1 = arith.constant 0 : i32
    return %arg0, %arg1, %c0_i32, %c0_i32_0 : i32, i32, i32, i32
  }
}

</mosaic_0001>

<llo_original>
// kernel: tpu_custom_call.1
$region0: #{tpu_custom_call.1}
  #allocation0 [shape = 'u32[]', space=smem, size = 0x4, offset = 0x4, fixed_abs, tag = 'smem constant byte address 0x4 - core index']
  #allocation1 [shape = 'u32[144,128]{1,0:T(1,128)}', space=vmem, size = 0x12000, scoped, tag = 'internal scratch']
  #allocation2 [shape = 's32[1]{0}', space=sflag, size = 0x4, scoped, tag = 'scoped memory for tpu_custom_call.1']
  #allocation3 [shape = 'u8[2048]{0}', space=smem, size = 0x800, scoped, tag = 'prefetched SMEM operand 0']
  #allocation4 [shape = 'u8[512]{0}', space=smem, size = 0x200, scoped, tag = 'prefetched SMEM operand 1']
  %s0 = inlined_call_operand.vmem [shape: f32[432], index: 0, kind: input, shape index: {}]
  %s1 = inlined_call_operand.vmem [shape: f32[4], index: 1, kind: input, shape index: {}]
  %s2 = inlined_call_operand.vmem [shape: f32[2,4,6,100], index: 2, kind: input, shape index: {}]
  %s3 = inlined_call_operand.hbm [shape: f32[2,4,4,100], index: 3, kind: output, shape index: {}]
  %s4 = sld [smem:[#allocation0]]
  $region37: #{tpu_custom_call.1} parent=0
    _
  %s6 = ssub.s32 1, %s4
  %s7 = scalar_select 0, %s6, %s4
  %s8 = sshll.u32 %s0, 4
  %s9 = int_to_ptr.vmem [resolvable:$true] %s8
  %11 = dma.vmem_to_smem %s9, 64, [#allocation3], [#allocation2]
  %s12 = sshll.u32 %s1, 4
  %s13 = int_to_ptr.vmem [resolvable:$true] %s12
  %15 = dma.vmem_to_smem %s13, 16, [#allocation4], [#allocation2]
  %16 = dma.done [#allocation2], 80
  %17 = sfence
  $region1: #{tpu_custom_call.1} parent=0
    #allocation5 [shape = 'u8[4096]{0}', space=vmem, size = 0x1000, scoped, tag = 'output window, operand 0']
    #allocation6 [shape = 's32[2]{0}', space=sflag, size = 0x8, scoped, tag = 'scoped memory for tpu_custom_call.1']
    %18 = vsyncpa [#allocation6], 0
    %s19 = scalar_lea.sflag [#allocation6], 1
    %20 = vsyncpa %s19, 0
    loop: start=0, step=1, limit=10
    $region2: #{tpu_custom_call.1} parent=1 // loop_pre_header
      _
    $region3: #{tpu_custom_call.1} parent=1 // loop_header
      %s22 = sphi 0, %s26
      %p23 = scmp.ge.s32.totalorder %s22, 10
      %s29 = sphi 0, %s41
      %s30 = sphi 0, %s37
      %s31 = sphi 0, %s29
      %s32 = sphi 0, %s30
      %s33 = sphi 0, %s31
      %s34 = sphi 0, %s32
      %s44 = sphi 0, %s46
      %s47 = sphi 0, %s44
      %s48 = sphi 0, %s47
      %s64 = sphi 0, %s48
      %s72 = sphi 0, %s74
      %s75 = sphi 0, %s72
      %s76 = sphi 0, %s75
      %s92 = sphi 0, %s76
    $region4: #{tpu_custom_call.1} parent=1 // loop_header_branch
      %25 = sbr.rel (%p23) target = $region8
    $region5: #{tpu_custom_call.1} parent=1 // loop_body
      %s27 = ssub.s32 %s22, 1
      %s28 = ssub.s32 %s22, 2
      %s35 = sadd.s32 1, %s30
      %p36 = scmp.ge.s32.totalorder %s35, 4
      %s37 = scalar_select %p36, 0, %s35
      %s38 = sadd.s32 1, %s29
      %s39 = scalar_select %p36, %s38, %s29
      %p40 = scmp.ge.s32.totalorder %s39, 2
      %s41 = scalar_select %p40, 0, %s39
      %s42 = ssub.s32 %s29, %s41
      %p43 = scmp.eq.s32.totalorder %s42, 0
      %s45 = sadd.s32 %s44, 1
      %s46 = scalar_select %p43, %s44, %s45
      %p49 = pneg %p43
      %p50 = scmp.eq.s32.totalorder %s22, 7
      %p51 = por %p49, %p50
      %p52 = scmp.ne.s32.totalorder %s44, %s47
      %p53 = scmp.eq.s32.totalorder %s22, 0
      %p54 = por %p52, %p53
      %p55 = scmp.ne.s32.totalorder %s44, %s47
      %p56 = scmp.eq.s32.totalorder %s27, 7
      %p57 = por %p55, %p56
      %p58 = scmp.ne.s32.totalorder %s47, %s48
      %p59 = scmp.eq.s32.totalorder %s27, 0
      %p60 = por %p58, %p59
      %p61 = scmp.ne.s32.totalorder %s47, %s48
      %p62 = scmp.eq.s32.totalorder %s28, 7
      %p63 = por %p61, %p62
      %p65 = scmp.ne.s32.totalorder %s48, %s64
      %p66 = scmp.eq.s32.totalorder %s28, 0
      %p67 = por %p65, %p66
      %s68 = ssub.s32 %s29, %s41
      %s69 = ssub.s32 %s30, %s37
      %s70 = sor.u32 %s68, %s69
      %p71 = scmp.eq.s32.totalorder %s70, 0
      %s73 = sadd.s32 %s72, 1
      %s74 = scalar_select %p71, %s72, %s73
      %p77 = pneg %p71
      %p78 = scmp.eq.s32.totalorder %s22, 7
      %p79 = por %p77, %p78
      %p80 = scmp.ne.s32.totalorder %s72, %s75
      %p81 = scmp.eq.s32.totalorder %s22, 0
      %p82 = por %p80, %p81
      %p83 = scmp.ne.s32.totalorder %s72, %s75
      %p84 = scmp.eq.s32.totalorder %s27, 7
      %p85 = por %p83, %p84
      %p86 = scmp.ne.s32.totalorder %s75, %s76
      %p87 = scmp.eq.s32.totalorder %s27, 0
      %p88 = por %p86, %p87
      %p89 = scmp.ne.s32.totalorder %s75, %s76
      %p90 = scmp.eq.s32.totalorder %s28, 7
      %p91 = por %p89, %p90
      %p93 = scmp.ne.s32.totalorder %s76, %s92
      %p94 = scmp.eq.s32.totalorder %s28, 0
      %p95 = por %p93, %p94
      %p96 = scmp.le.s32.totalorder 1, %s22
      %p97 = scmp.lt.s32.totalorder %s22, 9
      %p98 = pnand %p96, %p97
      %p99 = pneg %p98
      // Predicated region
      $region9: #{tpu_custom_call.1} parent=5 // pred_check
        _
      $region10: #{tpu_custom_call.1} parent=5 // pred_check_branch
        %101 = sbr.rel (%p98) target = $region12
      $region11: #{tpu_custom_call.1} parent=5 // pred_region
        %s102 = ssub.s32 %s22, 1
      $region12: #{tpu_custom_call.1} parent=5 // pred_fallthru
        _
      %p103 = scmp.lt.s32.totalorder %s22, 8
      // Predicated region
      $region13: #{tpu_custom_call.1} parent=5 // pred_check
        %p104 = pneg %p103
      $region14: #{tpu_custom_call.1} parent=5 // pred_check_branch
        %106 = sbr.rel (%p104) target = $region16
      $region15: #{tpu_custom_call.1} parent=5 // pred_region
        // Predicated region
        $region17: #{tpu_custom_call.1} parent=15 // pred_check
          %p107 = pneg %p54
        $region18: #{tpu_custom_call.1} parent=15 // pred_check_branch
          %109 = sbr.rel (%p107) target = $region20
        $region19: #{tpu_custom_call.1} parent=15 // pred_region
          %p110 = scmp.lt.s32.totalorder %s29, 1
          %s111 = scalar_select %p110, %s29, 1
          %s112 = smul.addr %s111, 4
          %s113 = smul.addr %s112, 8
          %s114 = scalar_lea.vmem %s2, %s113
        $region20: #{tpu_custom_call.1} parent=15 // pred_fallthru
          _
      $region16: #{tpu_custom_call.1} parent=5 // pred_fallthru
        _
      %p115 = scmp.le.s32.totalorder 1, %s22
      %p116 = scmp.lt.s32.totalorder %s22, 9
      %p117 = pnand %p115, %p116
      %p118 = pneg %p117
      // Predicated region
      $region21: #{tpu_custom_call.1} parent=5 // pred_check
        _
      $region22: #{tpu_custom_call.1} parent=5 // pred_check_branch
        %120 = sbr.rel (%p117) target = $region24
      $region23: #{tpu_custom_call.1} parent=5 // pred_region
        %s121 = ssub.s32 %s22, 1
        %p122 = scmp.lt.s32.totalorder %s31, 1
        %s123 = scalar_select %p122, %s31, 1
        %s124 = smul.addr %s123, 4
        %s125 = smul.addr %s124, 8
        %s126 = scalar_lea.vmem %s2, %s125
        %p127 = pneg %p60
        %p128 = pneg %p57
        %p129 = pneg %p88
        %p130 = pneg %p85
        %s131 = sand.u32 %s75, 1
        %s132 = scalar_lea.sflag [#allocation6], %s131
        %s133 = sand.u32 %s75, 1
        %s134 = smul.addr %s133, 4
        %s135 = scalar_lea.vmem [#allocation5], %s134
        %p136 = scmp.lt.s32.totalorder %s31, 1
        %s137 = scalar_select %p136, %s31, 1
        %s138 = smul.addr %s137, 4
        %s139 = smul.addr %s138, 8
        %s140 = scalar_lea.vmem %s2, %s139
        %s141 = smul.u32 %s32, 108
        %v142 = vld [vmem:[%s140] sm:$0x3f]
        %v143 = vld [vmem:[%s140 + $0x8] sm:$0x3f]
        %v144 = vld [vmem:[%s140 + $0x10] sm:$0x3f]
        %v145 = vld [vmem:[%s140 + $0x18] sm:$0x3f]
        %s146 = sld [smem:[#allocation3 + %s141]]
        %v147 = vstv %s146
        %v148 = vmul.f32 %v147, %v142
        %v149 = vadd.f32 %v148, 0.0
        %s150 = sadd.s32 %s141, 1
        %s151 = sld [smem:[#allocation3 + %s150]]
        %v152 = vstv %s151
        %v153 = vmul.f32 %v152, %v143
        %v154 = vadd.f32 %v149, %v153
        %s155 = sadd.s32 %s141, 2
        %s156 = sld [smem:[#allocation3 + %s155]]
        %v157 = vstv %s156
        %v158 = vmul.f32 %v157, %v144
        %v159 = vadd.f32 %v154, %v158
        %s160 = sadd.s32 %s141, 3
        %s161 = sld [smem:[#allocation3 + %s160]]
        %v162 = vstv %s161
        %v163 = vmul.f32 %v162, %v145
        %v164 = vadd.f32 %v159, %v163
        %vm165 = vcmask 1048352
        %166 = vrot.lane.b32.xlu0 %v142, 100
        %v167 = vpop.permute.xlu0 %166
        %v168 = vsel %vm165, %v167, %v142
        %169 = vrot.lane.b32.xlu0 %v143, 100
        %v170 = vpop.permute.xlu0 %169
        %v171 = vsel %vm165, %v170, %v143
        %172 = vrot.lane.b32.xlu0 %v144, 100
        %v173 = vpop.permute.xlu0 %172
        %v174 = vsel %vm165, %v173, %v144
        %175 = vrot.lane.b32.xlu0 %v145, 100
        %v176 = vpop.permute.xlu0 %175
        %v177 = vsel %vm165, %v176, %v145
        %178 = vrot.lane.b32.xlu0 %v168, 100
        %v179 = vpop.permute.xlu0 %178
        %180 = vrot.lane.b32.xlu0 %v171, 100
        %v181 = vpop.permute.xlu0 %180
        %182 = vrot.lane.b32.xlu0 %v174, 100
        %v183 = vpop.permute.xlu0 %182
        %184 = vrot.lane.b32.xlu0 %v177, 100
        %v185 = vpop.permute.xlu0 %184
        %v186 = vsel %vm165, %v179, %v142
        %v187 = vsel %vm165, %v181, %v143
        %v188 = vsel %vm165, %v183, %v144
        %v189 = vsel %vm165, %v185, %v145
        %s190 = sadd.s32 %s141, 4
        %s191 = sld [smem:[#allocation3 + %s190]]
        %v192 = vstv %s191
        %v193 = vmul.f32 %v192, %v186
        %195 = vrot.lane.b32.xlu0 %v193, 127
        %v196 = vpop.permute.xlu0 %195
        %v198 = vadd.f32 %v164, %v196
        %s199 = sadd.s32 %s141, 5
        %s200 = sld [smem:[#allocation3 + %s199]]
        %v201 = vstv %s200
        %v202 = vmul.f32 %v201, %v187
        %204 = vrot.lane.b32.xlu0 %v202, 127
        %v205 = vpop.permute.xlu0 %204
        %v207 = vadd.f32 %v198, %v205
        %s208 = sadd.s32 %s141, 6
        %s209 = sld [smem:[#allocation3 + %s208]]
        %v210 = vstv %s209
        %v211 = vmul.f32 %v210, %v188
        %213 = vrot.lane.b32.xlu0 %v211, 127
        %v214 = vpop.permute.xlu0 %213
        %v216 = vadd.f32 %v207, %v214
        %s217 = sadd.s32 %s141, 7
        %s218 = sld [smem:[#allocation3 + %s217]]
        %v219 = vstv %s218
        %v220 = vmul.f32 %v219, %v189
        %222 = vrot.lane.b32.xlu0 %v220, 127
        %v223 = vpop.permute.xlu0 %222
        %v225 = vadd.f32 %v216, %v223
        %s226 = sadd.s32 %s141, 8
        %s227 = sld [smem:[#allocation3 + %s226]]
        %v228 = vstv %s227
        %v229 = vmul.f32 %v228, %v186
        %231 = vrot.lane.b32.xlu0 %v229, 126
        %v232 = vpop.permute.xlu0 %231
        %v234 = vadd.f32 %v225, %v232
        %s235 = sadd.s32 %s141, 9
        %s236 = sld [smem:[#allocation3 + %s235]]
        %v237 = vstv %s236
        %v238 = vmul.f32 %v237, %v187
        %240 = vrot.lane.b32.xlu0 %v238, 126
        %v241 = vpop.permute.xlu0 %240
        %v243 = vadd.f32 %v234, %v241
        %s244 = sadd.s32 %s141, 10
        %s245 = sld [smem:[#allocation3 + %s244]]
        %v246 = vstv %s245
        %v247 = vmul.f32 %v246, %v188
        %249 = vrot.lane.b32.xlu0 %v247, 126
        %v250 = vpop.permute.xlu0 %249
        %v252 = vadd.f32 %v243, %v250
        %s253 = sadd.s32 %s141, 11
        %s254 = sld [smem:[#allocation3 + %s253]]
        %v255 = vstv %s254
        %v256 = vmul.f32 %v255, %v189
        %258 = vrot.lane.b32.xlu0 %v256, 126
        %v259 = vpop.permute.xlu0 %258
        %v261 = vadd.f32 %v252, %v259
        %s262 = sadd.s32 %s141, 12
        %s263 = sld [smem:[#allocation3 + %s262]]
        %v264 = vstv %s263
        %v265 = vmul.f32 %v264, %v186
        %267 = vrot.lane.b32.xlu0 %v265, 118
        %v268 = vpop.permute.xlu0 %267
        %v270 = vadd.f32 %v261, %v268
        %s271 = sadd.s32 %s141, 13
        %s272 = sld [smem:[#allocation3 + %s271]]
        %v273 = vstv %s272
        %v274 = vmul.f32 %v273, %v187
        %276 = vrot.lane.b32.xlu0 %v274, 118
        %v277 = vpop.permute.xlu0 %276
        %v279 = vadd.f32 %v270, %v277
        %s280 = sadd.s32 %s141, 14
        %s281 = sld [smem:[#allocation3 + %s280]]
        %v282 = vstv %s281
        %v283 = vmul.f32 %v282, %v188
        %285 = vrot.lane.b32.xlu0 %v283, 118
        %v286 = vpop.permute.xlu0 %285
        %v288 = vadd.f32 %v279, %v286
        %s289 = sadd.s32 %s141, 15
        %s290 = sld [smem:[#allocation3 + %s289]]
        %v291 = vstv %s290
        %v292 = vmul.f32 %v291, %v189
        %294 = vrot.lane.b32.xlu0 %v292, 118
        %v295 = vpop.permute.xlu0 %294
        %v297 = vadd.f32 %v288, %v295
        %s298 = sadd.s32 %s141, 16
        %s299 = sld [smem:[#allocation3 + %s298]]
        %v300 = vstv %s299
        %v301 = vmul.f32 %v300, %v186
        %303 = vrot.lane.b32.xlu0 %v301, 117
        %v304 = vpop.permute.xlu0 %303
        %v306 = vadd.f32 %v297, %v304
        %s307 = sadd.s32 %s141, 17
        %s308 = sld [smem:[#allocation3 + %s307]]
        %v309 = vstv %s308
        %v310 = vmul.f32 %v309, %v187
        %312 = vrot.lane.b32.xlu0 %v310, 117
        %v313 = vpop.permute.xlu0 %312
        %v315 = vadd.f32 %v306, %v313
        %s316 = sadd.s32 %s141, 18
        %s317 = sld [smem:[#allocation3 + %s316]]
        %v318 = vstv %s317
        %v319 = vmul.f32 %v318, %v188
        %321 = vrot.lane.b32.xlu0 %v319, 117
        %v322 = vpop.permute.xlu0 %321
        %v324 = vadd.f32 %v315, %v322
        %s325 = sadd.s32 %s141, 19
        %s326 = sld [smem:[#allocation3 + %s325]]
        %v327 = vstv %s326
        %v328 = vmul.f32 %v327, %v189
        %330 = vrot.lane.b32.xlu0 %v328, 117
        %v331 = vpop.permute.xlu0 %330
        %v333 = vadd.f32 %v324, %v331
        %s334 = sadd.s32 %s141, 20
        %s335 = sld [smem:[#allocation3 + %s334]]
        %v336 = vstv %s335
        %v337 = vmul.f32 %v336, %v186
        %339 = vrot.lane.b32.xlu0 %v337, 116
        %v340 = vpop.permute.xlu0 %339
        %v342 = vadd.f32 %v333, %v340
        %s343 = sadd.s32 %s141, 21
        %s344 = sld [smem:[#allocation3 + %s343]]
        %v345 = vstv %s344
        %v346 = vmul.f32 %v345, %v187
        %348 = vrot.lane.b32.xlu0 %v346, 116
        %v349 = vpop.permute.xlu0 %348
        %v351 = vadd.f32 %v342, %v349
        %s352 = sadd.s32 %s141, 22
        %s353 = sld [smem:[#allocation3 + %s352]]
        %v354 = vstv %s353
        %v355 = vmul.f32 %v354, %v188
        %357 = vrot.lane.b32.xlu0 %v355, 116
        %v358 = vpop.permute.xlu0 %357
        %v360 = vadd.f32 %v351, %v358
        %s361 = sadd.s32 %s141, 23
        %s362 = sld [smem:[#allocation3 + %s361]]
        %v363 = vstv %s362
        %v364 = vmul.f32 %v363, %v189
        %366 = vrot.lane.b32.xlu0 %v364, 116
        %v367 = vpop.permute.xlu0 %366
        %v369 = vadd.f32 %v360, %v367
        %s370 = sadd.s32 %s141, 24
        %s371 = sld [smem:[#allocation3 + %s370]]
        %v372 = vstv %s371
        %v373 = vmul.f32 %v372, %v186
        %375 = vrot.lane.b32.xlu0 %v373, 108
        %v376 = vpop.permute.xlu0 %375
        %v378 = vadd.f32 %v369, %v376
        %s379 = sadd.s32 %s141, 25
        %s380 = sld [smem:[#allocation3 + %s379]]
        %v381 = vstv %s380
        %v382 = vmul.f32 %v381, %v187
        %384 = vrot.lane.b32.xlu0 %v382, 108
        %v385 = vpop.permute.xlu0 %384
        %v387 = vadd.f32 %v378, %v385
        %s388 = sadd.s32 %s141, 26
        %s389 = sld [smem:[#allocation3 + %s388]]
        %v390 = vstv %s389
        %v391 = vmul.f32 %v390, %v188
        %393 = vrot.lane.b32.xlu0 %v391, 108
        %v394 = vpop.permute.xlu0 %393
        %v396 = vadd.f32 %v387, %v394
        %s397 = sadd.s32 %s141, 27
        %s398 = sld [smem:[#allocation3 + %s397]]
        %v399 = vstv %s398
        %v400 = vmul.f32 %v399, %v189
        %402 = vrot.lane.b32.xlu0 %v400, 108
        %v403 = vpop.permute.xlu0 %402
        %v405 = vadd.f32 %v396, %v403
        %s406 = sadd.s32 %s141, 28
        %s407 = sld [smem:[#allocation3 + %s406]]
        %v408 = vstv %s407
        %v409 = vmul.f32 %v408, %v186
        %411 = vrot.lane.b32.xlu0 %v409, 107
        %v412 = vpop.permute.xlu0 %411
        %v414 = vadd.f32 %v405, %v412
        %s415 = sadd.s32 %s141, 29
        %s416 = sld [smem:[#allocation3 + %s415]]
        %v417 = vstv %s416
        %v418 = vmul.f32 %v417, %v187
        %420 = vrot.lane.b32.xlu0 %v418, 107
        %v421 = vpop.permute.xlu0 %420
        %v423 = vadd.f32 %v414, %v421
        %s424 = sadd.s32 %s141, 30
        %s425 = sld [smem:[#allocation3 + %s424]]
        %v426 = vstv %s425
        %v427 = vmul.f32 %v426, %v188
        %429 = vrot.lane.b32.xlu0 %v427, 107
        %v430 = vpop.permute.xlu0 %429
        %v432 = vadd.f32 %v423, %v430
        %s433 = sadd.s32 %s141, 31
        %s434 = sld [smem:[#allocation3 + %s433]]
        %v435 = vstv %s434
        %v436 = vmul.f32 %v435, %v189
        %438 = vrot.lane.b32.xlu0 %v436, 107
        %v439 = vpop.permute.xlu0 %438
        %v441 = vadd.f32 %v432, %v439
        %s442 = sadd.s32 %s141, 32
        %s443 = sld [smem:[#allocation3 + %s442]]
        %v444 = vstv %s443
        %v445 = vmul.f32 %v444, %v186
        %447 = vrot.lane.b32.xlu0 %v445, 106
        %v448 = vpop.permute.xlu0 %447
        %v450 = vadd.f32 %v441, %v448
        %s451 = sadd.s32 %s141, 33
        %s452 = sld [smem:[#allocation3 + %s451]]
        %v453 = vstv %s452
        %v454 = vmul.f32 %v453, %v187
        %456 = vrot.lane.b32.xlu0 %v454, 106
        %v457 = vpop.permute.xlu0 %456
        %v459 = vadd.f32 %v450, %v457
        %s460 = sadd.s32 %s141, 34
        %s461 = sld [smem:[#allocation3 + %s460]]
        %v462 = vstv %s461
        %v463 = vmul.f32 %v462, %v188
        %465 = vrot.lane.b32.xlu0 %v463, 106
        %v466 = vpop.permute.xlu0 %465
        %v468 = vadd.f32 %v459, %v466
        %s469 = sadd.s32 %s141, 35
        %s470 = sld [smem:[#allocation3 + %s469]]
        %v471 = vstv %s470
        %v472 = vmul.f32 %v471, %v189
        %474 = vrot.lane.b32.xlu0 %v472, 106
        %v475 = vpop.permute.xlu0 %474
        %v477 = vadd.f32 %v468, %v475
        %s478 = sadd.s32 %s141, 36
        %s479 = sld [smem:[#allocation3 + %s478]]
        %v480 = vstv %s479
        %v481 = vmul.f32 %v480, %v142
        %v483 = vrot.slane %v481, 1
        %v485 = vadd.f32 %v477, %v483
        %s486 = sadd.s32 %s141, 37
        %s487 = sld [smem:[#allocation3 + %s486]]
        %v488 = vstv %s487
        %v489 = vmul.f32 %v488, %v143
        %v491 = vrot.slane %v489, 1
        %v493 = vadd.f32 %v485, %v491
        %s494 = sadd.s32 %s141, 38
        %s495 = sld [smem:[#allocation3 + %s494]]
        %v496 = vstv %s495
        %v497 = vmul.f32 %v496, %v144
        %v499 = vrot.slane %v497, 1
        %v501 = vadd.f32 %v493, %v499
        %s502 = sadd.s32 %s141, 39
        %s503 = sld [smem:[#allocation3 + %s502]]
        %v504 = vstv %s503
        %v505 = vmul.f32 %v504, %v145
        %v507 = vrot.slane %v505, 1
        %v509 = vadd.f32 %v501, %v507
        %v514 = vrot.slane %v142, 1
        %v515 = vrot.slane %v143, 1
        %v516 = vrot.slane %v144, 1
        %v517 = vrot.slane %v145, 1
        %522 = vrot.lane.b32.xlu0 %v514, 100
        %v523 = vpop.permute.xlu0 %522
        %v524 = vsel %vm165, %v523, %v514
        %525 = vrot.lane.b32.xlu0 %v515, 100
        %v526 = vpop.permute.xlu0 %525
        %v527 = vsel %vm165, %v526, %v515
        %528 = vrot.lane.b32.xlu0 %v516, 100
        %v529 = vpop.permute.xlu0 %528
        %v530 = vsel %vm165, %v529, %v516
        %531 = vrot.lane.b32.xlu0 %v517, 100
        %v532 = vpop.permute.xlu0 %531
        %v533 = vsel %vm165, %v532, %v517
        %534 = vrot.lane.b32.xlu0 %v524, 100
        %v535 = vpop.permute.xlu0 %534
        %536 = vrot.lane.b32.xlu0 %v527, 100
        %v537 = vpop.permute.xlu0 %536
        %538 = vrot.lane.b32.xlu0 %v530, 100
        %v539 = vpop.permute.xlu0 %538
        %540 = vrot.lane.b32.xlu0 %v533, 100
        %v541 = vpop.permute.xlu0 %540
        %v542 = vsel %vm165, %v535, %v514
        %v543 = vsel %vm165, %v537, %v515
        %v544 = vsel %vm165, %v539, %v516
        %v545 = vsel %vm165, %v541, %v517
        %s546 = sadd.s32 %s141, 40
        %s547 = sld [smem:[#allocation3 + %s546]]
        %v548 = vstv %s547
        %v549 = vmul.f32 %v548, %v542
        %551 = vrot.lane.b32.xlu0 %v549, 127
        %v552 = vpop.permute.xlu0 %551
        %v554 = vadd.f32 %v509, %v552
        %s555 = sadd.s32 %s141, 41
        %s556 = sld [smem:[#allocation3 + %s555]]
        %v557 = vstv %s556
        %v558 = vmul.f32 %v557, %v543
        %560 = vrot.lane.b32.xlu0 %v558, 127
        %v561 = vpop.permute.xlu0 %560
        %v563 = vadd.f32 %v554, %v561
        %s564 = sadd.s32 %s141, 42
        %s565 = sld [smem:[#allocation3 + %s564]]
        %v566 = vstv %s565
        %v567 = vmul.f32 %v566, %v544
        %569 = vrot.lane.b32.xlu0 %v567, 127
        %v570 = vpop.permute.xlu0 %569
        %v572 = vadd.f32 %v563, %v570
        %s573 = sadd.s32 %s141, 43
        %s574 = sld [smem:[#allocation3 + %s573]]
        %v575 = vstv %s574
        %v576 = vmul.f32 %v575, %v545
        %578 = vrot.lane.b32.xlu0 %v576, 127
        %v579 = vpop.permute.xlu0 %578
        %v581 = vadd.f32 %v572, %v579
        %s582 = sadd.s32 %s141, 44
        %s583 = sld [smem:[#allocation3 + %s582]]
        %v584 = vstv %s583
        %v585 = vmul.f32 %v584, %v542
        %587 = vrot.lane.b32.xlu0 %v585, 126
        %v588 = vpop.permute.xlu0 %587
        %v590 = vadd.f32 %v581, %v588
        %s591 = sadd.s32 %s141, 45
        %s592 = sld [smem:[#allocation3 + %s591]]
        %v593 = vstv %s592
        %v594 = vmul.f32 %v593, %v543
        %596 = vrot.lane.b32.xlu0 %v594, 126
        %v597 = vpop.permute.xlu0 %596
        %v599 = vadd.f32 %v590, %v597
        %s600 = sadd.s32 %s141, 46
        %s601 = sld [smem:[#allocation3 + %s600]]
        %v602 = vstv %s601
        %v603 = vmul.f32 %v602, %v544
        %605 = vrot.lane.b32.xlu0 %v603, 126
        %v606 = vpop.permute.xlu0 %605
        %v608 = vadd.f32 %v599, %v606
        %s609 = sadd.s32 %s141, 47
        %s610 = sld [smem:[#allocation3 + %s609]]
        %v611 = vstv %s610
        %v612 = vmul.f32 %v611, %v545
        %614 = vrot.lane.b32.xlu0 %v612, 126
        %v615 = vpop.permute.xlu0 %614
        %v617 = vadd.f32 %v608, %v615
        %s618 = sadd.s32 %s141, 48
        %s619 = sld [smem:[#allocation3 + %s618]]
        %v620 = vstv %s619
        %v621 = vmul.f32 %v620, %v542
        %623 = vrot.lane.b32.xlu0 %v621, 118
        %v624 = vpop.permute.xlu0 %623
        %v626 = vadd.f32 %v617, %v624
        %s627 = sadd.s32 %s141, 49
        %s628 = sld [smem:[#allocation3 + %s627]]
        %v629 = vstv %s628
        %v630 = vmul.f32 %v629, %v543
        %632 = vrot.lane.b32.xlu0 %v630, 118
        %v633 = vpop.permute.xlu0 %632
        %v635 = vadd.f32 %v626, %v633
        %s636 = sadd.s32 %s141, 50
        %s637 = sld [smem:[#allocation3 + %s636]]
        %v638 = vstv %s637
        %v639 = vmul.f32 %v638, %v544
        %641 = vrot.lane.b32.xlu0 %v639, 118
        %v642 = vpop.permute.xlu0 %641
        %v644 = vadd.f32 %v635, %v642
        %s645 = sadd.s32 %s141, 51
        %s646 = sld [smem:[#allocation3 + %s645]]
        %v647 = vstv %s646
        %v648 = vmul.f32 %v647, %v545
        %650 = vrot.lane.b32.xlu0 %v648, 118
        %v651 = vpop.permute.xlu0 %650
        %v653 = vadd.f32 %v644, %v651
        %s654 = sadd.s32 %s141, 52
        %s655 = sld [smem:[#allocation3 + %s654]]
        %v656 = vstv %s655
        %v657 = vmul.f32 %v656, %v542
        %659 = vrot.lane.b32.xlu0 %v657, 117
        %v660 = vpop.permute.xlu0 %659
        %v662 = vadd.f32 %v653, %v660
        %s663 = sadd.s32 %s141, 53
        %s664 = sld [smem:[#allocation3 + %s663]]
        %v665 = vstv %s664
        %v666 = vmul.f32 %v665, %v543
        %668 = vrot.lane.b32.xlu0 %v666, 117
        %v669 = vpop.permute.xlu0 %668
        %v671 = vadd.f32 %v662, %v669
        %s672 = sadd.s32 %s141, 54
        %s673 = sld [smem:[#allocation3 + %s672]]
        %v674 = vstv %s673
        %v675 = vmul.f32 %v674, %v544
        %677 = vrot.lane.b32.xlu0 %v675, 117
        %v678 = vpop.permute.xlu0 %677
        %v680 = vadd.f32 %v671, %v678
        %s681 = sadd.s32 %s141, 55
        %s682 = sld [smem:[#allocation3 + %s681]]
        %v683 = vstv %s682
        %v684 = vmul.f32 %v683, %v545
        %686 = vrot.lane.b32.xlu0 %v684, 117
        %v687 = vpop.permute.xlu0 %686
        %v689 = vadd.f32 %v680, %v687
        %s690 = sadd.s32 %s141, 56
        %s691 = sld [smem:[#allocation3 + %s690]]
        %v692 = vstv %s691
        %v693 = vmul.f32 %v692, %v542
        %695 = vrot.lane.b32.xlu0 %v693, 116
        %v696 = vpop.permute.xlu0 %695
        %v698 = vadd.f32 %v689, %v696
        %s699 = sadd.s32 %s141, 57
        %s700 = sld [smem:[#allocation3 + %s699]]
        %v701 = vstv %s700
        %v702 = vmul.f32 %v701, %v543
        %704 = vrot.lane.b32.xlu0 %v702, 116
        %v705 = vpop.permute.xlu0 %704
        %v707 = vadd.f32 %v698, %v705
        %s708 = sadd.s32 %s141, 58
        %s709 = sld [smem:[#allocation3 + %s708]]
        %v710 = vstv %s709
        %v711 = vmul.f32 %v710, %v544
        %713 = vrot.lane.b32.xlu0 %v711, 116
        %v714 = vpop.permute.xlu0 %713
        %v716 = vadd.f32 %v707, %v714
        %s717 = sadd.s32 %s141, 59
        %s718 = sld [smem:[#allocation3 + %s717]]
        %v719 = vstv %s718
        %v720 = vmul.f32 %v719, %v545
        %722 = vrot.lane.b32.xlu0 %v720, 116
        %v723 = vpop.permute.xlu0 %722
        %v725 = vadd.f32 %v716, %v723
        %s726 = sadd.s32 %s141, 60
        %s727 = sld [smem:[#allocation3 + %s726]]
        %v728 = vstv %s727
        %v729 = vmul.f32 %v728, %v542
        %731 = vrot.lane.b32.xlu0 %v729, 108
        %v732 = vpop.permute.xlu0 %731
        %v734 = vadd.f32 %v725, %v732
        %s735 = sadd.s32 %s141, 61
        %s736 = sld [smem:[#allocation3 + %s735]]
        %v737 = vstv %s736
        %v738 = vmul.f32 %v737, %v543
        %740 = vrot.lane.b32.xlu0 %v738, 108
        %v741 = vpop.permute.xlu0 %740
        %v743 = vadd.f32 %v734, %v741
        %s744 = sadd.s32 %s141, 62
        %s745 = sld [smem:[#allocation3 + %s744]]
        %v746 = vstv %s745
        %v747 = vmul.f32 %v746, %v544
        %749 = vrot.lane.b32.xlu0 %v747, 108
        %v750 = vpop.permute.xlu0 %749
        %v752 = vadd.f32 %v743, %v750
        %s753 = sadd.s32 %s141, 63
        %s754 = sld [smem:[#allocation3 + %s753]]
        %v755 = vstv %s754
        %v756 = vmul.f32 %v755, %v545
        %758 = vrot.lane.b32.xlu0 %v756, 108
        %v759 = vpop.permute.xlu0 %758
        %v761 = vadd.f32 %v752, %v759
        %s762 = sadd.s32 %s141, 64
        %s763 = sld [smem:[#allocation3 + %s762]]
        %v764 = vstv %s763
        %v765 = vmul.f32 %v764, %v542
        %767 = vrot.lane.b32.xlu0 %v765, 107
        %v768 = vpop.permute.xlu0 %767
        %v770 = vadd.f32 %v761, %v768
        %s771 = sadd.s32 %s141, 65
        %s772 = sld [smem:[#allocation3 + %s771]]
        %v773 = vstv %s772
        %v774 = vmul.f32 %v773, %v543
        %776 = vrot.lane.b32.xlu0 %v774, 107
        %v777 = vpop.permute.xlu0 %776
        %v779 = vadd.f32 %v770, %v777
        %s780 = sadd.s32 %s141, 66
        %s781 = sld [smem:[#allocation3 + %s780]]
        %v782 = vstv %s781
        %v783 = vmul.f32 %v782, %v544
        %785 = vrot.lane.b32.xlu0 %v783, 107
        %v786 = vpop.permute.xlu0 %785
        %v788 = vadd.f32 %v779, %v786
        %s789 = sadd.s32 %s141, 67
        %s790 = sld [smem:[#allocation3 + %s789]]
        %v791 = vstv %s790
        %v792 = vmul.f32 %v791, %v545
        %794 = vrot.lane.b32.xlu0 %v792, 107
        %v795 = vpop.permute.xlu0 %794
        %v797 = vadd.f32 %v788, %v795
        %s798 = sadd.s32 %s141, 68
        %s799 = sld [smem:[#allocation3 + %s798]]
        %v800 = vstv %s799
        %v801 = vmul.f32 %v800, %v542
        %803 = vrot.lane.b32.xlu0 %v801, 106
        %v804 = vpop.permute.xlu0 %803
        %v806 = vadd.f32 %v797, %v804
        %s807 = sadd.s32 %s141, 69
        %s808 = sld [smem:[#allocation3 + %s807]]
        %v809 = vstv %s808
        %v810 = vmul.f32 %v809, %v543
        %812 = vrot.lane.b32.xlu0 %v810, 106
        %v813 = vpop.permute.xlu0 %812
        %v815 = vadd.f32 %v806, %v813
        %s816 = sadd.s32 %s141, 70
        %s817 = sld [smem:[#allocation3 + %s816]]
        %v818 = vstv %s817
        %v819 = vmul.f32 %v818, %v544
        %821 = vrot.lane.b32.xlu0 %v819, 106
        %v822 = vpop.permute.xlu0 %821
        %v824 = vadd.f32 %v815, %v822
        %s825 = sadd.s32 %s141, 71
        %s826 = sld [smem:[#allocation3 + %s825]]
        %v827 = vstv %s826
        %v828 = vmul.f32 %v827, %v545
        %830 = vrot.lane.b32.xlu0 %v828, 106
        %v831 = vpop.permute.xlu0 %830
        %v833 = vadd.f32 %v824, %v831
        %s834 = sadd.s32 %s141, 72
        %s835 = sld [smem:[#allocation3 + %s834]]
        %v836 = vstv %s835
        %v837 = vmul.f32 %v836, %v142
        %v839 = vrot.slane %v837, 2
        %v841 = vadd.f32 %v833, %v839
        %s842 = sadd.s32 %s141, 73
        %s843 = sld [smem:[#allocation3 + %s842]]
        %v844 = vstv %s843
        %v845 = vmul.f32 %v844, %v143
        %v847 = vrot.slane %v845, 2
        %v849 = vadd.f32 %v841, %v847
        %s850 = sadd.s32 %s141, 74
        %s851 = sld [smem:[#allocation3 + %s850]]
        %v852 = vstv %s851
        %v853 = vmul.f32 %v852, %v144
        %v855 = vrot.slane %v853, 2
        %v857 = vadd.f32 %v849, %v855
        %s858 = sadd.s32 %s141, 75
        %s859 = sld [smem:[#allocation3 + %s858]]
        %v860 = vstv %s859
        %v861 = vmul.f32 %v860, %v145
        %v863 = vrot.slane %v861, 2
        %v865 = vadd.f32 %v857, %v863
        %v866 = vrot.slane %v142, 2
        %v867 = vrot.slane %v143, 2
        %v868 = vrot.slane %v144, 2
        %v869 = vrot.slane %v145, 2
        %874 = vrot.lane.b32.xlu0 %v866, 100
        %v875 = vpop.permute.xlu0 %874
        %v876 = vsel %vm165, %v875, %v866
        %877 = vrot.lane.b32.xlu0 %v867, 100
        %v878 = vpop.permute.xlu0 %877
        %v879 = vsel %vm165, %v878, %v867
        %880 = vrot.lane.b32.xlu0 %v868, 100
        %v881 = vpop.permute.xlu0 %880
        %v882 = vsel %vm165, %v881, %v868
        %883 = vrot.lane.b32.xlu0 %v869, 100
        %v884 = vpop.permute.xlu0 %883
        %v885 = vsel %vm165, %v884, %v869
        %886 = vrot.lane.b32.xlu0 %v876, 100
        %v887 = vpop.permute.xlu0 %886
        %888 = vrot.lane.b32.xlu0 %v879, 100
        %v889 = vpop.permute.xlu0 %888
        %890 = vrot.lane.b32.xlu0 %v882, 100
        %v891 = vpop.permute.xlu0 %890
        %892 = vrot.lane.b32.xlu0 %v885, 100
        %v893 = vpop.permute.xlu0 %892
        %v894 = vsel %vm165, %v887, %v866
        %v895 = vsel %vm165, %v889, %v867
        %v896 = vsel %vm165, %v891, %v868
        %v897 = vsel %vm165, %v893, %v869
        %s898 = sadd.s32 %s141, 76
        %s899 = sld [smem:[#allocation3 + %s898]]
        %v900 = vstv %s899
        %v901 = vmul.f32 %v900, %v894
        %903 = vrot.lane.b32.xlu0 %v901, 127
        %v904 = vpop.permute.xlu0 %903
        %v906 = vadd.f32 %v865, %v904
        %s907 = sadd.s32 %s141, 77
        %s908 = sld [smem:[#allocation3 + %s907]]
        %v909 = vstv %s908
        %v910 = vmul.f32 %v909, %v895
        %912 = vrot.lane.b32.xlu0 %v910, 127
        %v913 = vpop.permute.xlu0 %912
        %v915 = vadd.f32 %v906, %v913
        %s916 = sadd.s32 %s141, 78
        %s917 = sld [smem:[#allocation3 + %s916]]
        %v918 = vstv %s917
        %v919 = vmul.f32 %v918, %v896
        %921 = vrot.lane.b32.xlu0 %v919, 127
        %v922 = vpop.permute.xlu0 %921
        %v924 = vadd.f32 %v915, %v922
        %s925 = sadd.s32 %s141, 79
        %s926 = sld [smem:[#allocation3 + %s925]]
        %v927 = vstv %s926
        %v928 = vmul.f32 %v927, %v897
        %930 = vrot.lane.b32.xlu0 %v928, 127
        %v931 = vpop.permute.xlu0 %930
        %v933 = vadd.f32 %v924, %v931
        %s934 = sadd.s32 %s141, 80
        %s935 = sld [smem:[#allocation3 + %s934]]
        %v936 = vstv %s935
        %v937 = vmul.f32 %v936, %v894
        %939 = vrot.lane.b32.xlu0 %v937, 126
        %v940 = vpop.permute.xlu0 %939
        %v942 = vadd.f32 %v933, %v940
        %s943 = sadd.s32 %s141, 81
        %s944 = sld [smem:[#allocation3 + %s943]]
        %v945 = vstv %s944
        %v946 = vmul.f32 %v945, %v895
        %948 = vrot.lane.b32.xlu0 %v946, 126
        %v949 = vpop.permute.xlu0 %948
        %v951 = vadd.f32 %v942, %v949
        %s952 = sadd.s32 %s141, 82
        %s953 = sld [smem:[#allocation3 + %s952]]
        %v954 = vstv %s953
        %v955 = vmul.f32 %v954, %v896
        %957 = vrot.lane.b32.xlu0 %v955, 126
        %v958 = vpop.permute.xlu0 %957
        %v960 = vadd.f32 %v951, %v958
        %s961 = sadd.s32 %s141, 83
        %s962 = sld [smem:[#allocation3 + %s961]]
        %v963 = vstv %s962
        %v964 = vmul.f32 %v963, %v897
        %966 = vrot.lane.b32.xlu0 %v964, 126
        %v967 = vpop.permute.xlu0 %966
        %v969 = vadd.f32 %v960, %v967
        %s970 = sadd.s32 %s141, 84
        %s971 = sld [smem:[#allocation3 + %s970]]
        %v972 = vstv %s971
        %v973 = vmul.f32 %v972, %v894
        %975 = vrot.lane.b32.xlu0 %v973, 118
        %v976 = vpop.permute.xlu0 %975
        %v978 = vadd.f32 %v969, %v976
        %s979 = sadd.s32 %s141, 85
        %s980 = sld [smem:[#allocation3 + %s979]]
        %v981 = vstv %s980
        %v982 = vmul.f32 %v981, %v895
        %984 = vrot.lane.b32.xlu0 %v982, 118
        %v985 = vpop.permute.xlu0 %984
        %v987 = vadd.f32 %v978, %v985
        %s988 = sadd.s32 %s141, 86
        %s989 = sld [smem:[#allocation3 + %s988]]
        %v990 = vstv %s989
        %v991 = vmul.f32 %v990, %v896
        %993 = vrot.lane.b32.xlu0 %v991, 118
        %v994 = vpop.permute.xlu0 %993
        %v996 = vadd.f32 %v987, %v994
        %s997 = sadd.s32 %s141, 87
        %s998 = sld [smem:[#allocation3 + %s997]]
        %v999 = vstv %s998
        %v1000 = vmul.f32 %v999, %v897
        %1002 = vrot.lane.b32.xlu0 %v1000, 118
        %v1003 = vpop.permute.xlu0 %1002
        %v1005 = vadd.f32 %v996, %v1003
        %s1006 = sadd.s32 %s141, 88
        %s1007 = sld [smem:[#allocation3 + %s1006]]
        %v1008 = vstv %s1007
        %v1009 = vmul.f32 %v1008, %v894
        %1011 = vrot.lane.b32.xlu0 %v1009, 117
        %v1012 = vpop.permute.xlu0 %1011
        %v1014 = vadd.f32 %v1005, %v1012
        %s1015 = sadd.s32 %s141, 89
        %s1016 = sld [smem:[#allocation3 + %s1015]]
        %v1017 = vstv %s1016
        %v1018 = vmul.f32 %v1017, %v895
        %1020 = vrot.lane.b32.xlu0 %v1018, 117
        %v1021 = vpop.permute.xlu0 %1020
        %v1023 = vadd.f32 %v1014, %v1021
        %s1024 = sadd.s32 %s141, 90
        %s1025 = sld [smem:[#allocation3 + %s1024]]
        %v1026 = vstv %s1025
        %v1027 = vmul.f32 %v1026, %v896
        %1029 = vrot.lane.b32.xlu0 %v1027, 117
        %v1030 = vpop.permute.xlu0 %1029
        %v1032 = vadd.f32 %v1023, %v1030
        %s1033 = sadd.s32 %s141, 91
        %s1034 = sld [smem:[#allocation3 + %s1033]]
        %v1035 = vstv %s1034
        %v1036 = vmul.f32 %v1035, %v897
        %1038 = vrot.lane.b32.xlu0 %v1036, 117
        %v1039 = vpop.permute.xlu0 %1038
        %v1041 = vadd.f32 %v1032, %v1039
        %s1042 = sadd.s32 %s141, 92
        %s1043 = sld [smem:[#allocation3 + %s1042]]
        %v1044 = vstv %s1043
        %v1045 = vmul.f32 %v1044, %v894
        %1047 = vrot.lane.b32.xlu0 %v1045, 116
        %v1048 = vpop.permute.xlu0 %1047
        %v1050 = vadd.f32 %v1041, %v1048
        %s1051 = sadd.s32 %s141, 93
        %s1052 = sld [smem:[#allocation3 + %s1051]]
        %v1053 = vstv %s1052
        %v1054 = vmul.f32 %v1053, %v895
        %1056 = vrot.lane.b32.xlu0 %v1054, 116
        %v1057 = vpop.permute.xlu0 %1056
        %v1059 = vadd.f32 %v1050, %v1057
        %s1060 = sadd.s32 %s141, 94
        %s1061 = sld [smem:[#allocation3 + %s1060]]
        %v1062 = vstv %s1061
        %v1063 = vmul.f32 %v1062, %v896
        %1065 = vrot.lane.b32.xlu0 %v1063, 116
        %v1066 = vpop.permute.xlu0 %1065
        %v1068 = vadd.f32 %v1059, %v1066
        %s1069 = sadd.s32 %s141, 95
        %s1070 = sld [smem:[#allocation3 + %s1069]]
        %v1071 = vstv %s1070
        %v1072 = vmul.f32 %v1071, %v897
        %1074 = vrot.lane.b32.xlu0 %v1072, 116
        %v1075 = vpop.permute.xlu0 %1074
        %v1077 = vadd.f32 %v1068, %v1075
        %s1078 = sadd.s32 %s141, 96
        %s1079 = sld [smem:[#allocation3 + %s1078]]
        %v1080 = vstv %s1079
        %v1081 = vmul.f32 %v1080, %v894
        %1083 = vrot.lane.b32.xlu0 %v1081, 108
        %v1084 = vpop.permute.xlu0 %1083
        %v1086 = vadd.f32 %v1077, %v1084
        %s1087 = sadd.s32 %s141, 97
        %s1088 = sld [smem:[#allocation3 + %s1087]]
        %v1089 = vstv %s1088
        %v1090 = vmul.f32 %v1089, %v895
        %1092 = vrot.lane.b32.xlu0 %v1090, 108
        %v1093 = vpop.permute.xlu0 %1092
        %v1095 = vadd.f32 %v1086, %v1093
        %s1096 = sadd.s32 %s141, 98
        %s1097 = sld [smem:[#allocation3 + %s1096]]
        %v1098 = vstv %s1097
        %v1099 = vmul.f32 %v1098, %v896
        %1101 = vrot.lane.b32.xlu0 %v1099, 108
        %v1102 = vpop.permute.xlu0 %1101
        %v1104 = vadd.f32 %v1095, %v1102
        %s1105 = sadd.s32 %s141, 99
        %s1106 = sld [smem:[#allocation3 + %s1105]]
        %v1107 = vstv %s1106
        %v1108 = vmul.f32 %v1107, %v897
        %1110 = vrot.lane.b32.xlu0 %v1108, 108
        %v1111 = vpop.permute.xlu0 %1110
        %v1113 = vadd.f32 %v1104, %v1111
        %s1114 = sadd.s32 %s141, 100
        %s1115 = sld [smem:[#allocation3 + %s1114]]
        %v1116 = vstv %s1115
        %v1117 = vmul.f32 %v1116, %v894
        %1119 = vrot.lane.b32.xlu0 %v1117, 107
        %v1120 = vpop.permute.xlu0 %1119
        %v1122 = vadd.f32 %v1113, %v1120
        %s1123 = sadd.s32 %s141, 101
        %s1124 = sld [smem:[#allocation3 + %s1123]]
        %v1125 = vstv %s1124
        %v1126 = vmul.f32 %v1125, %v895
        %1128 = vrot.lane.b32.xlu0 %v1126, 107
        %v1129 = vpop.permute.xlu0 %1128
        %v1131 = vadd.f32 %v1122, %v1129
        %s1132 = sadd.s32 %s141, 102
        %s1133 = sld [smem:[#allocation3 + %s1132]]
        %v1134 = vstv %s1133
        %v1135 = vmul.f32 %v1134, %v896
        %1137 = vrot.lane.b32.xlu0 %v1135, 107
        %v1138 = vpop.permute.xlu0 %1137
        %v1140 = vadd.f32 %v1131, %v1138
        %s1141 = sadd.s32 %s141, 103
        %s1142 = sld [smem:[#allocation3 + %s1141]]
        %v1143 = vstv %s1142
        %v1144 = vmul.f32 %v1143, %v897
        %1146 = vrot.lane.b32.xlu0 %v1144, 107
        %v1147 = vpop.permute.xlu0 %1146
        %v1149 = vadd.f32 %v1140, %v1147
        %s1150 = sadd.s32 %s141, 104
        %s1151 = sld [smem:[#allocation3 + %s1150]]
        %v1152 = vstv %s1151
        %v1153 = vmul.f32 %v1152, %v894
        %1155 = vrot.lane.b32.xlu0 %v1153, 106
        %v1156 = vpop.permute.xlu0 %1155
        %v1158 = vadd.f32 %v1149, %v1156
        %s1159 = sadd.s32 %s141, 105
        %s1160 = sld [smem:[#allocation3 + %s1159]]
        %v1161 = vstv %s1160
        %v1162 = vmul.f32 %v1161, %v895
        %1164 = vrot.lane.b32.xlu0 %v1162, 106
        %v1165 = vpop.permute.xlu0 %1164
        %v1167 = vadd.f32 %v1158, %v1165
        %s1168 = sadd.s32 %s141, 106
        %s1169 = sld [smem:[#allocation3 + %s1168]]
        %v1170 = vstv %s1169
        %v1171 = vmul.f32 %v1170, %v896
        %1173 = vrot.lane.b32.xlu0 %v1171, 106
        %v1174 = vpop.permute.xlu0 %1173
        %v1176 = vadd.f32 %v1167, %v1174
        %s1177 = sadd.s32 %s141, 107
        %s1178 = sld [smem:[#allocation3 + %s1177]]
        %v1179 = vstv %s1178
        %v1180 = vmul.f32 %v1179, %v897
        %1182 = vrot.lane.b32.xlu0 %v1180, 106
        %v1183 = vpop.permute.xlu0 %1182
        %v1185 = vadd.f32 %v1176, %v1183
        %s1186 = sld [smem:[#allocation4 + %s32]]
        %v1187 = vstv %s1186
        %v1188 = vadd.f32 %v1185, %v1187
        %vm1189 = vcmask 814080
        %1190 = vst.msk [vmem:[%s135] sm:$0xf] %vm1189, %v1188
        %s1191 = sand.u32 %s75, 1
        %s1192 = scalar_lea.sflag [#allocation6], %s1191
        %s1193 = sand.u32 %s75, 1
        %s1194 = smul.addr %s1193, 4
        %s1195 = scalar_lea.vmem [#allocation5], %s1194
        // Predicated region
        $region25: #{tpu_custom_call.1} parent=23 // pred_check
          %p1196 = pneg %p85
        $region26: #{tpu_custom_call.1} parent=23 // pred_check_branch
          %1198 = sbr.rel (%p1196) target = $region28
        $region27: #{tpu_custom_call.1} parent=23 // pred_region
          %s1200 = ssub.s32 64, 64
          %1201 = vsyncadd %s1192, %s1200
          %s1202 = smul.addr %s31, 4
          %s1203 = sadd.s32 %s32, %s1202
          %s1204 = smul.addr %s1203, 64
          %s1205 = scalar_lea.hbm %s3, %s1204
          %s1207 = sshll.u32 %s1195, 4
          %s1208 = int_to_ptr.vmem [resolvable:$true] %s1207
          %1210 = dma.vmem_to_hbm [thread:$0]  %s1208, 64, %s1205, %s1192
        $region28: #{tpu_custom_call.1} parent=23 // pred_fallthru
          _
      $region24: #{tpu_custom_call.1} parent=5 // pred_fallthru
        _
      %p1211 = scmp.le.s32.totalorder 2, %s22
      // Predicated region
      $region29: #{tpu_custom_call.1} parent=5 // pred_check
        %p1212 = pneg %p1211
      $region30: #{tpu_custom_call.1} parent=5 // pred_check_branch
        %1214 = sbr.rel (%p1212) target = $region32
      $region31: #{tpu_custom_call.1} parent=5 // pred_region
        %s1215 = ssub.s32 %s22, 2
        // Predicated region
        $region33: #{tpu_custom_call.1} parent=31 // pred_check
          %p1216 = pneg %p91
        $region34: #{tpu_custom_call.1} parent=31 // pred_check_branch
          %1218 = sbr.rel (%p1216) target = $region36
        $region35: #{tpu_custom_call.1} parent=31 // pred_region
          %s1219 = sand.u32 %s76, 1
          %s1220 = scalar_lea.sflag [#allocation6], %s1219
          %s1221 = sand.u32 %s76, 1
          %s1222 = smul.addr %s1221, 4
          %s1223 = scalar_lea.vmem [#allocation5], %s1222
          %1224 = dma.done %s1220, 64
        $region36: #{tpu_custom_call.1} parent=31 // pred_fallthru
          _
      $region32: #{tpu_custom_call.1} parent=5 // pred_fallthru
        _
    $region6: #{tpu_custom_call.1} parent=1 // loop_footer
      %s26 = sadd.s32 1, %s22
    $region7: #{tpu_custom_call.1} parent=1 // loop_footer_branch
      %21 = sbr.rel target = $region3
    $region8: #{tpu_custom_call.1} parent=1 // loop_exit
      _
    %1225 = vsyncpa [#allocation6], 1
    %s1226 = scalar_lea.sflag [#allocation6], 1
    %1227 = vsyncpa %s1226, 1

</llo_original>
